<compile_context>
chip_gen: v6e
topology: v6e:2x2x1
jax: 0.10.0
libtpu: 0.0.40
codegen_flags: <defaults>
</compile_context>

<pallas_src>
import jax
import jax.numpy as jnp
from jax.experimental import pallas as pl
from jax.experimental.pallas import tpu as pltpu


Z_DIM = 8
IN_DIM = 28 * 28          # 784


def _round_up(n, m):
    return ((n + m - 1) // m) * m


def _nbytes(a):
    return int(a.size) * a.dtype.itemsize


def vae_kernel(
    x_ref, eps_ref,
    # encoder params (weights bf16, biases f32)
    ew1, eb1, ew2, eb2, ew3, eb3, ew4, eb4,
    # decoder params
    dw1, db1, dw2, db2, dw3, db3, dw4, db4,
    # outputs
    xt_ref, kl_ref,
):
    f32 = jnp.float32
    bf16 = jnp.bfloat16

    x = x_ref[...]                                                     # (TB, 784) bf16

    # ---------------- encoder (bf16 matmuls, f32 accumulate / elementwise) ----
    h = jnp.maximum(jnp.dot(x, ew1[...], preferred_element_type=f32) + eb1[...], 0.0)
    h = jnp.maximum(jnp.dot(h.astype(bf16), ew2[...], preferred_element_type=f32) + eb2[...], 0.0)
    h = jnp.maximum(jnp.dot(h.astype(bf16), ew3[...], preferred_element_type=f32) + eb3[...], 0.0)
    mv = jnp.dot(h.astype(bf16), ew4[...], preferred_element_type=f32) + eb4[...]  # (TB, 16)
    mu = mv[:, :Z_DIM]                                                 # chunk(2, dim=1)
    logvar = mv[:, Z_DIM:]

    # ---------------- KL( N(mu, std) || N(0, 1) ), per-sample sum over z -----
    var = jnp.exp(logvar)
    kl_elem = 0.5 * (mu * mu + var - 1.0 - logvar)                     # (TB, z)
    kl_ref[...] = jnp.sum(kl_elem, axis=1, keepdims=True)              # (TB, 1)

    # ---------------- reparameterized sample ---------------------------------
    std = jnp.exp(0.5 * logvar)
    z = mu + std * eps_ref[...]                                        # (TB, z)

    # ---------------- decoder ------------------------------------------------
    d = jnp.maximum(jnp.dot(z.astype(bf16), dw1[...], preferred_element_type=f32) + db1[...], 0.0)
    d = jnp.maximum(jnp.dot(d.astype(bf16), dw2[...], preferred_element_type=f32) + db2[...], 0.0)
    d = jnp.maximum(jnp.dot(d.astype(bf16), dw3[...], preferred_element_type=f32) + db3[...], 0.0)
    d = jnp.dot(d.astype(bf16), dw4[...], preferred_element_type=f32) + db4[...]   # (TB, 784)
    xt_ref[...] = jnp.tanh(d).astype(xt_ref.dtype)                     # bf16 out


def init_linear(key, fan_in, fan_out):
    """PyTorch-Linear-style uniform(+/- 1/sqrt(fan_in)).
    Returns W of shape (fan_in, fan_out) and b of shape (1, fan_out)."""
    kw, kb = jax.random.split(key)
    bound = 1.0 / jnp.sqrt(jnp.float32(fan_in))
    w = jax.random.uniform(kw, (fan_in, fan_out), jnp.float32, -bound, bound)
    b = jax.random.uniform(kb, (1, fan_out), jnp.float32, -bound, bound)
    return w, b


def make_params(key, z_dim=Z_DIM):
    """Weights stored bf16 (MXU-native), biases f32.  No feature padding."""
    keys = jax.random.split(key, 8)
    bf16 = jnp.bfloat16
    # encoder: 784 -> 128 -> 64 -> 32 -> 2*z  (mu/logvar kept merged)
    ew1, eb1 = init_linear(keys[0], IN_DIM, 128)
    ew2, eb2 = init_linear(keys[1], 128, 64)
    ew3, eb3 = init_linear(keys[2], 64, 32)
    ew4, eb4 = init_linear(keys[3], 32, 2 * z_dim)
    # decoder: z -> 32 -> 64 -> 128 -> 784
    dw1, db1 = init_linear(keys[4], z_dim, 32)
    dw2, db2 = init_linear(keys[5], 32, 64)
    dw3, db3 = init_linear(keys[6], 64, 128)
    dw4, db4 = init_linear(keys[7], 128, IN_DIM)
    enc = (ew1.astype(bf16), eb1, ew2.astype(bf16), eb2,
           ew3.astype(bf16), eb3, ew4.astype(bf16), eb4)
    dec = (dw1.astype(bf16), db1, dw2.astype(bf16), db2,
           dw3.astype(bf16), db3, dw4.astype(bf16), db4)
    return enc, dec


def _pick_tile(batch, tile_cap):
    """Batch tile: multiple of 8, <= cap, >= 2 grid steps when the batch allows
    it (v7x megacore), and preferring a tile that divides the 8-rounded batch
    so no batch-pad HBM copy is needed."""
    b8 = _round_up(batch, 8)
    cap = max(8, min(_round_up(tile_cap, 8), b8))
    if b8 >= 16:
        cap = min(cap, _round_up(pl.cdiv(b8, 2), 8))   # at least 2 grid steps
    # prefer an exactly-dividing tile (no jnp.pad copy of x / eps)
    t = cap
    while t >= max(8, cap // 4):
        if b8 % t == 0:
            return t, b8
        t -= 8
    return cap, _round_up(b8, cap)


def vae_forward(x, eps, enc_params, dec_params, *, tile_b=1024):
    B = x.shape[0]
    assert x.shape[1] == IN_DIM
    params = (*enc_params, *dec_params)

    tile, B_pad = _pick_tile(B, tile_b)
    n_blocks = B_pad // tile

    xb = x.astype(jnp.bfloat16)                 # bf16 I/O (kernel casts anyway)
    ep = eps.astype(jnp.float32)
    if B_pad != B:                              # only pad batch when needed
        xb = jnp.pad(xb, ((0, B_pad - B), (0, 0)))
        ep = jnp.pad(ep, ((0, B_pad - B), (0, 0)))

    def batch_spec(width):
        return pl.BlockSpec((tile, width), lambda i: (i, 0))

    def full_spec(shape):
        # whole array resident in VMEM, same block for every grid step
        return pl.BlockSpec(shape, lambda i: tuple(0 for _ in shape))

    in_specs = ([batch_spec(IN_DIM), batch_spec(Z_DIM)]
                + [full_spec(p.shape) for p in params])
    out_specs = (batch_spec(IN_DIM),
                 pl.BlockSpec((tile, 1), lambda i: (i, 0)))
    out_shape = (
        jax.ShapeDtypeStruct((B_pad, IN_DIM), jnp.bfloat16),   # x_tilde (bf16)
        jax.ShapeDtypeStruct((B_pad, 1), jnp.float32),         # per-sample KL
    )

    flops = 2 * B_pad * sum(int(w.shape[0]) * int(w.shape[1]) for w in params[0::2])
    transcendentals = B_pad * (2 * Z_DIM + IN_DIM)             # exp(logvar), exp(.5lv), tanh
    bytes_accessed = (_nbytes(xb) + _nbytes(ep)
                      + sum(_nbytes(p) for p in params)
                      + B_pad * IN_DIM * 2 + B_pad * 4)        # bf16 out + f32 kl

    xt, kl_ps = pl.pallas_call(
        vae_kernel,
        out_shape=out_shape,
        grid=(n_blocks,),
        in_specs=in_specs,
        out_specs=out_specs,
        compiler_params=pltpu.CompilerParams(
            dimension_semantics=("parallel",),
            vmem_limit_bytes=48 * 1024 * 1024),
        cost_estimate=pl.CostEstimate(
            flops=flops,
            transcendentals=transcendentals,
            bytes_accessed=bytes_accessed),
    )(xb, ep, *params)

    x_tilde = xt if B_pad == B else xt[:B]
    kl_div = jnp.sum(kl_ps[:B, 0]) / B                         # mean over true batch
    return x_tilde, kl_div


def vae_forward_ref(x, eps, enc_params, dec_params):
    """Pure-JAX reference with the same bf16-matmul / f32-elementwise recipe."""
    ew1, eb1, ew2, eb2, ew3, eb3, ew4, eb4 = enc_params
    dw1, db1, dw2, db2, dw3, db3, dw4, db4 = dec_params
    bf16 = jnp.bfloat16

    def mm(a, w, b):
        return jnp.dot(a.astype(bf16), w, preferred_element_type=jnp.float32) + b

    h = jnp.maximum(mm(x, ew1, eb1), 0.0)
    h = jnp.maximum(mm(h, ew2, eb2), 0.0)
    h = jnp.maximum(mm(h, ew3, eb3), 0.0)
    mv = mm(h, ew4, eb4)
    mu, logvar = mv[:, :Z_DIM], mv[:, Z_DIM:]
    kl = 0.5 * (mu * mu + jnp.exp(logvar) - 1.0 - logvar)
    kl_div = jnp.mean(jnp.sum(kl, axis=1))
    z = mu + jnp.exp(0.5 * logvar) * eps
    d = jnp.maximum(mm(z, dw1, db1), 0.0)
    d = jnp.maximum(mm(d, dw2, db2), 0.0)
    d = jnp.maximum(mm(d, dw3, db3), 0.0)
    d = mm(d, dw4, db4)
    return jnp.tanh(d).astype(bf16), kl_div


if __name__ == "__main__":
    key = jax.random.PRNGKey(0)
    k_params, k_x, k_eps = jax.random.split(key, 3)

    B = 64
    enc_params, dec_params = make_params(k_params)
    x = jax.random.normal(k_x, (B, IN_DIM), jnp.float32)
    eps = jax.random.normal(k_eps, (B, Z_DIM), jnp.float32)    # noise for rsample()

    # B=64 -> auto-picked tile_b=32, 2 grid steps (exercises the batch pipeline
    # and the v7x two-TC "parallel" split at small scale).
    fwd = jax.jit(vae_forward)
    x_tilde, kl_div = fwd(x, eps, enc_params, dec_params)
    x_tilde = jax.block_until_ready(x_tilde)
    kl_div = jax.block_until_ready(kl_div)

    # sanity check against pure-JAX reference
    xt_ref, kl_ref = vae_forward_ref(x, eps, enc_params, dec_params)
    assert x_tilde.shape == (B, IN_DIM) and x_tilde.dtype == jnp.bfloat16
    assert jnp.allclose(x_tilde.astype(jnp.float32), xt_ref.astype(jnp.float32),
                        atol=1e-2, rtol=0)                     # bf16 output quantization
    assert jnp.allclose(kl_div, kl_ref, atol=5e-3, rtol=5e-3)

    print("KERNEL_OK")
</pallas_src>

<mosaic_0001>
module attributes {stable_mosaic.version = 11 : i64} {
  func.func @vae_kernel(%arg0: i32, %arg1: memref<32x784xbf16, #tpu.memory_space<vmem>>, %arg2: memref<32x8xf32, #tpu.memory_space<vmem>>, %arg3: memref<784x128xbf16, #tpu.memory_space<vmem>>, %arg4: memref<1x128xf32, #tpu.memory_space<vmem>>, %arg5: memref<128x64xbf16, #tpu.memory_space<vmem>>, %arg6: memref<1x64xf32, #tpu.memory_space<vmem>>, %arg7: memref<64x32xbf16, #tpu.memory_space<vmem>>, %arg8: memref<1x32xf32, #tpu.memory_space<vmem>>, %arg9: memref<32x16xbf16, #tpu.memory_space<vmem>>, %arg10: memref<1x16xf32, #tpu.memory_space<vmem>>, %arg11: memref<8x32xbf16, #tpu.memory_space<vmem>>, %arg12: memref<1x32xf32, #tpu.memory_space<vmem>>, %arg13: memref<32x64xbf16, #tpu.memory_space<vmem>>, %arg14: memref<1x64xf32, #tpu.memory_space<vmem>>, %arg15: memref<64x128xbf16, #tpu.memory_space<vmem>>, %arg16: memref<1x128xf32, #tpu.memory_space<vmem>>, %arg17: memref<128x784xbf16, #tpu.memory_space<vmem>>, %arg18: memref<1x784xf32, #tpu.memory_space<vmem>>, %arg19: memref<32x784xbf16, #tpu.memory_space<vmem>>, %arg20: memref<32x1xf32, #tpu.memory_space<vmem>>) attributes {dimension_semantics = [#tpu.dimension_semantics<parallel>], iteration_bounds = array<i64: 2>, scalar_prefetch = 0 : i64, scratch_operands = 0 : i64, tpu.core_type = #tpu.core_type<tc>, window_params = [{transform_indices = @transform_0, window_bounds = array<i64: 32, 784>}, {transform_indices = @transform_1, window_bounds = array<i64: 32, 8>}, {pipeline_mode = #tpu.pipeline_mode<synchronous>, transform_indices = @transform_2, window_bounds = array<i64: 784, 128>}, {pipeline_mode = #tpu.pipeline_mode<synchronous>, transform_indices = @transform_3, window_bounds = array<i64: 1, 128>}, {pipeline_mode = #tpu.pipeline_mode<synchronous>, transform_indices = @transform_4, window_bounds = array<i64: 128, 64>}, {pipeline_mode = #tpu.pipeline_mode<synchronous>, transform_indices = @transform_5, window_bounds = array<i64: 1, 64>}, {pipeline_mode = #tpu.pipeline_mode<synchronous>, transform_indices = @transform_6, window_bounds = array<i64: 64, 32>}, {pipeline_mode = #tpu.pipeline_mode<synchronous>, transform_indices = @transform_7, window_bounds = array<i64: 1, 32>}, {pipeline_mode = #tpu.pipeline_mode<synchronous>, transform_indices = @transform_8, window_bounds = array<i64: 32, 16>}, {pipeline_mode = #tpu.pipeline_mode<synchronous>, transform_indices = @transform_9, window_bounds = array<i64: 1, 16>}, {pipeline_mode = #tpu.pipeline_mode<synchronous>, transform_indices = @transform_10, window_bounds = array<i64: 8, 32>}, {pipeline_mode = #tpu.pipeline_mode<synchronous>, transform_indices = @transform_11, window_bounds = array<i64: 1, 32>}, {pipeline_mode = #tpu.pipeline_mode<synchronous>, transform_indices = @transform_12, window_bounds = array<i64: 32, 64>}, {pipeline_mode = #tpu.pipeline_mode<synchronous>, transform_indices = @transform_13, window_bounds = array<i64: 1, 64>}, {pipeline_mode = #tpu.pipeline_mode<synchronous>, transform_indices = @transform_14, window_bounds = array<i64: 64, 128>}, {pipeline_mode = #tpu.pipeline_mode<synchronous>, transform_indices = @transform_15, window_bounds = array<i64: 1, 128>}, {pipeline_mode = #tpu.pipeline_mode<synchronous>, transform_indices = @transform_16, window_bounds = array<i64: 128, 784>}, {pipeline_mode = #tpu.pipeline_mode<synchronous>, transform_indices = @transform_17, window_bounds = array<i64: 1, 784>}, {transform_indices = @transform_18, window_bounds = array<i64: 32, 784>}, {transform_indices = @transform_19, window_bounds = array<i64: 32, 1>}]} {
    %c0 = arith.constant 0 : index
    %c0_0 = arith.constant 0 : index
    %0 = vector.load %arg1[%c0, %c0_0] : memref<32x784xbf16, #tpu.memory_space<vmem>>, vector<32x784xbf16>
    %c0_1 = arith.constant 0 : index
    %c0_2 = arith.constant 0 : index
    %1 = vector.load %arg3[%c0_1, %c0_2] : memref<784x128xbf16, #tpu.memory_space<vmem>>, vector<784x128xbf16>
    %cst = arith.constant dense<0.000000e+00> : vector<32x128xf32>
    %2 = tpu.matmul %0, %1, %cst {dimension_numbers = #tpu.dot_dimension_numbers<[1], [0], [0], [1], [0, 0, 1, 1], [], []>} : vector<32x784xbf16>, vector<784x128xbf16>, vector<32x128xf32> -> vector<32x128xf32>
    %c0_3 = arith.constant 0 : index
    %c0_4 = arith.constant 0 : index
    %3 = vector.load %arg4[%c0_3, %c0_4] : memref<1x128xf32, #tpu.memory_space<vmem>>, vector<1x128xf32>
    %4 = vector.broadcast %3 : vector<1x128xf32> to vector<32x128xf32>
    %5 = arith.addf %2, %4 : vector<32x128xf32>
    %cst_5 = arith.constant 0.000000e+00 : f32
    %6 = vector.broadcast %cst_5 : f32 to vector<32x128xf32>
    %7 = arith.maximumf %5, %6 : vector<32x128xf32>
    %8 = arith.truncf %7 : vector<32x128xf32> to vector<32x128xbf16>
    %c0_6 = arith.constant 0 : index
    %c0_7 = arith.constant 0 : index
    %9 = vector.load %arg5[%c0_6, %c0_7] : memref<128x64xbf16, #tpu.memory_space<vmem>>, vector<128x64xbf16>
    %cst_8 = arith.constant dense<0.000000e+00> : vector<32x64xf32>
    %10 = tpu.matmul %8, %9, %cst_8 {dimension_numbers = #tpu.dot_dimension_numbers<[1], [0], [0], [1], [0, 0, 1, 1], [], []>} : vector<32x128xbf16>, vector<128x64xbf16>, vector<32x64xf32> -> vector<32x64xf32>
    %c0_9 = arith.constant 0 : index
    %c0_10 = arith.constant 0 : index
    %11 = vector.load %arg6[%c0_9, %c0_10] : memref<1x64xf32, #tpu.memory_space<vmem>>, vector<1x64xf32>
    %12 = vector.broadcast %11 : vector<1x64xf32> to vector<32x64xf32>
    %13 = arith.addf %10, %12 : vector<32x64xf32>
    %cst_11 = arith.constant 0.000000e+00 : f32
    %14 = vector.broadcast %cst_11 : f32 to vector<32x64xf32>
    %15 = arith.maximumf %13, %14 : vector<32x64xf32>
    %16 = arith.truncf %15 : vector<32x64xf32> to vector<32x64xbf16>
    %c0_12 = arith.constant 0 : index
    %c0_13 = arith.constant 0 : index
    %17 = vector.load %arg7[%c0_12, %c0_13] : memref<64x32xbf16, #tpu.memory_space<vmem>>, vector<64x32xbf16>
    %cst_14 = arith.constant dense<0.000000e+00> : vector<32x32xf32>
    %18 = tpu.matmul %16, %17, %cst_14 {dimension_numbers = #tpu.dot_dimension_numbers<[1], [0], [0], [1], [0, 0, 1, 1], [], []>} : vector<32x64xbf16>, vector<64x32xbf16>, vector<32x32xf32> -> vector<32x32xf32>
    %c0_15 = arith.constant 0 : index
    %c0_16 = arith.constant 0 : index
    %19 = vector.load %arg8[%c0_15, %c0_16] : memref<1x32xf32, #tpu.memory_space<vmem>>, vector<1x32xf32>
    %20 = vector.broadcast %19 : vector<1x32xf32> to vector<32x32xf32>
    %21 = arith.addf %18, %20 : vector<32x32xf32>
    %cst_17 = arith.constant 0.000000e+00 : f32
    %22 = vector.broadcast %cst_17 : f32 to vector<32x32xf32>
    %23 = arith.maximumf %21, %22 : vector<32x32xf32>
    %24 = arith.truncf %23 : vector<32x32xf32> to vector<32x32xbf16>
    %c0_18 = arith.constant 0 : index
    %c0_19 = arith.constant 0 : index
    %25 = vector.load %arg9[%c0_18, %c0_19] : memref<32x16xbf16, #tpu.memory_space<vmem>>, vector<32x16xbf16>
    %cst_20 = arith.constant dense<0.000000e+00> : vector<32x16xf32>
    %26 = tpu.matmul %24, %25, %cst_20 {dimension_numbers = #tpu.dot_dimension_numbers<[1], [0], [0], [1], [0, 0, 1, 1], [], []>} : vector<32x32xbf16>, vector<32x16xbf16>, vector<32x16xf32> -> vector<32x16xf32>
    %c0_21 = arith.constant 0 : index
    %c0_22 = arith.constant 0 : index
    %27 = vector.load %arg10[%c0_21, %c0_22] : memref<1x16xf32, #tpu.memory_space<vmem>>, vector<1x16xf32>
    %28 = vector.broadcast %27 : vector<1x16xf32> to vector<32x16xf32>
    %29 = arith.addf %26, %28 : vector<32x16xf32>
    %30 = vector.extract_strided_slice %29 {offsets = [0, 0], sizes = [32, 8], strides = [1, 1]} : vector<32x16xf32> to vector<32x8xf32>
    %31 = vector.extract_strided_slice %29 {offsets = [0, 8], sizes = [32, 8], strides = [1, 1]} : vector<32x16xf32> to vector<32x8xf32>
    %32 = math.exp %31 : vector<32x8xf32>
    %33 = arith.mulf %30, %30 : vector<32x8xf32>
    %34 = arith.addf %33, %32 : vector<32x8xf32>
    %cst_23 = arith.constant 1.000000e+00 : f32
    %35 = vector.broadcast %cst_23 : f32 to vector<32x8xf32>
    %36 = arith.subf %34, %35 : vector<32x8xf32>
    %37 = arith.subf %36, %31 : vector<32x8xf32>
    %cst_24 = arith.constant 5.000000e-01 : f32
    %38 = vector.broadcast %cst_24 : f32 to vector<32x8xf32>
    %39 = arith.mulf %38, %37 : vector<32x8xf32>
    %cst_25 = arith.constant dense<0.000000e+00> : vector<32xf32>
    %40 = vector.multi_reduction <add>, %39, %cst_25 [1] : vector<32x8xf32> to vector<32xf32>
    %41 = vector.shape_cast %40 : vector<32xf32> to vector<32x1xf32>
    %c0_26 = arith.constant 0 : index
    %c0_27 = arith.constant 0 : index
    %42 = vector.load %arg20[%c0_26, %c0_27] : memref<32x1xf32, #tpu.memory_space<vmem>>, vector<32x1xf32>
    tpu.vector_store %arg20[%c0_26, %c0_27], %41 {strides = array<i32>} : memref<32x1xf32, #tpu.memory_space<vmem>>, vector<32x1xf32>,
    %cst_28 = arith.constant 5.000000e-01 : f32
    %43 = vector.broadcast %cst_28 : f32 to vector<32x8xf32>
    %44 = arith.mulf %43, %31 : vector<32x8xf32>
    %45 = math.exp %44 : vector<32x8xf32>
    %c0_29 = arith.constant 0 : index
    %c0_30 = arith.constant 0 : index
    %46 = vector.load %arg2[%c0_29, %c0_30] : memref<32x8xf32, #tpu.memory_space<vmem>>, vector<32x8xf32>
    %47 = arith.mulf %45, %46 : vector<32x8xf32>
    %48 = arith.addf %30, %47 : vector<32x8xf32>
    %49 = arith.truncf %48 : vector<32x8xf32> to vector<32x8xbf16>
    %c0_31 = arith.constant 0 : index
    %c0_32 = arith.constant 0 : index
    %50 = vector.load %arg11[%c0_31, %c0_32] : memref<8x32xbf16, #tpu.memory_space<vmem>>, vector<8x32xbf16>
    %cst_33 = arith.constant dense<0.000000e+00> : vector<32x32xf32>
    %51 = tpu.matmul %49, %50, %cst_33 {dimension_numbers = #tpu.dot_dimension_numbers<[1], [0], [0], [1], [0, 0, 1, 1], [], []>} : vector<32x8xbf16>, vector<8x32xbf16>, vector<32x32xf32> -> vector<32x32xf32>
    %c0_34 = arith.constant 0 : index
    %c0_35 = arith.constant 0 : index
    %52 = vector.load %arg12[%c0_34, %c0_35] : memref<1x32xf32, #tpu.memory_space<vmem>>, vector<1x32xf32>
    %53 = vector.broadcast %52 : vector<1x32xf32> to vector<32x32xf32>
    %54 = arith.addf %51, %53 : vector<32x32xf32>
    %cst_36 = arith.constant 0.000000e+00 : f32
    %55 = vector.broadcast %cst_36 : f32 to vector<32x32xf32>
    %56 = arith.maximumf %54, %55 : vector<32x32xf32>
    %57 = arith.truncf %56 : vector<32x32xf32> to vector<32x32xbf16>
    %c0_37 = arith.constant 0 : index
    %c0_38 = arith.constant 0 : index
    %58 = vector.load %arg13[%c0_37, %c0_38] : memref<32x64xbf16, #tpu.memory_space<vmem>>, vector<32x64xbf16>
    %cst_39 = arith.constant dense<0.000000e+00> : vector<32x64xf32>
    %59 = tpu.matmul %57, %58, %cst_39 {dimension_numbers = #tpu.dot_dimension_numbers<[1], [0], [0], [1], [0, 0, 1, 1], [], []>} : vector<32x32xbf16>, vector<32x64xbf16>, vector<32x64xf32> -> vector<32x64xf32>
    %c0_40 = arith.constant 0 : index
    %c0_41 = arith.constant 0 : index
    %60 = vector.load %arg14[%c0_40, %c0_41] : memref<1x64xf32, #tpu.memory_space<vmem>>, vector<1x64xf32>
    %61 = vector.broadcast %60 : vector<1x64xf32> to vector<32x64xf32>
    %62 = arith.addf %59, %61 : vector<32x64xf32>
    %cst_42 = arith.constant 0.000000e+00 : f32
    %63 = vector.broadcast %cst_42 : f32 to vector<32x64xf32>
    %64 = arith.maximumf %62, %63 : vector<32x64xf32>
    %65 = arith.truncf %64 : vector<32x64xf32> to vector<32x64xbf16>
    %c0_43 = arith.constant 0 : index
    %c0_44 = arith.constant 0 : index
    %66 = vector.load %arg15[%c0_43, %c0_44] : memref<64x128xbf16, #tpu.memory_space<vmem>>, vector<64x128xbf16>
    %cst_45 = arith.constant dense<0.000000e+00> : vector<32x128xf32>
    %67 = tpu.matmul %65, %66, %cst_45 {dimension_numbers = #tpu.dot_dimension_numbers<[1], [0], [0], [1], [0, 0, 1, 1], [], []>} : vector<32x64xbf16>, vector<64x128xbf16>, vector<32x128xf32> -> vector<32x128xf32>
    %c0_46 = arith.constant 0 : index
    %c0_47 = arith.constant 0 : index
    %68 = vector.load %arg16[%c0_46, %c0_47] : memref<1x128xf32, #tpu.memory_space<vmem>>, vector<1x128xf32>
    %69 = vector.broadcast %68 : vector<1x128xf32> to vector<32x128xf32>
    %70 = arith.addf %67, %69 : vector<32x128xf32>
    %cst_48 = arith.constant 0.000000e+00 : f32
    %71 = vector.broadcast %cst_48 : f32 to vector<32x128xf32>
    %72 = arith.maximumf %70, %71 : vector<32x128xf32>
    %73 = arith.truncf %72 : vector<32x128xf32> to vector<32x128xbf16>
    %c0_49 = arith.constant 0 : index
    %c0_50 = arith.constant 0 : index
    %74 = vector.load %arg17[%c0_49, %c0_50] : memref<128x784xbf16, #tpu.memory_space<vmem>>, vector<128x784xbf16>
    %cst_51 = arith.constant dense<0.000000e+00> : vector<32x784xf32>
    %75 = tpu.matmul %73, %74, %cst_51 {dimension_numbers = #tpu.dot_dimension_numbers<[1], [0], [0], [1], [0, 0, 1, 1], [], []>} : vector<32x128xbf16>, vector<128x784xbf16>, vector<32x784xf32> -> vector<32x784xf32>
    %c0_52 = arith.constant 0 : index
    %c0_53 = arith.constant 0 : index
    %76 = vector.load %arg18[%c0_52, %c0_53] : memref<1x784xf32, #tpu.memory_space<vmem>>, vector<1x784xf32>
    %77 = vector.broadcast %76 : vector<1x784xf32> to vector<32x784xf32>
    %78 = arith.addf %75, %77 : vector<32x784xf32>
    %79 = math.tanh %78 : vector<32x784xf32>
    %80 = arith.truncf %79 : vector<32x784xf32> to vector<32x784xbf16>
    %c0_54 = arith.constant 0 : index
    %c0_55 = arith.constant 0 : index
    %81 = vector.load %arg19[%c0_54, %c0_55] : memref<32x784xbf16, #tpu.memory_space<vmem>>, vector<32x784xbf16>
    tpu.vector_store %arg19[%c0_54, %c0_55], %80 {strides = array<i32>} : memref<32x784xbf16, #tpu.memory_space<vmem>>, vector<32x784xbf16>,
    return
  }
  func.func @transform_0(%arg0: i32) -> (i32, i32) {
    %c0_i32 = arith.constant 0 : i32
    %c0_i32_0 = arith.constant 0 : i32
    return %arg0, %c0_i32 : i32, i32
  }
  func.func @transform_1(%arg0: i32) -> (i32, i32) {
    %c0_i32 = arith.constant 0 : i32
    %c0_i32_0 = arith.constant 0 : i32
    return %arg0, %c0_i32 : i32, i32
  }
  func.func @transform_2(%arg0: i32) -> (i32, i32) {
    %c0_i32 = arith.constant 0 : i32
    %c0_i32_0 = arith.constant 0 : i32
    %c0_i32_1 = arith.constant 0 : i32
    return %c0_i32, %c0_i32_0 : i32, i32
  }
  func.func @transform_3(%arg0: i32) -> (i32, i32) {
    %c0_i32 = arith.constant 0 : i32
    %c0_i32_0 = arith.constant 0 : i32
    %c0_i32_1 = arith.constant 0 : i32
    return %c0_i32, %c0_i32_0 : i32, i32
  }
  func.func @transform_4(%arg0: i32) -> (i32, i32) {
    %c0_i32 = arith.constant 0 : i32
    %c0_i32_0 = arith.constant 0 : i32
    %c0_i32_1 = arith.constant 0 : i32
    return %c0_i32, %c0_i32_0 : i32, i32
  }
  func.func @transform_5(%arg0: i32) -> (i32, i32) {
    %c0_i32 = arith.constant 0 : i32
    %c0_i32_0 = arith.constant 0 : i32
    %c0_i32_1 = arith.constant 0 : i32
    return %c0_i32, %c0_i32_0 : i32, i32
  }
  func.func @transform_6(%arg0: i32) -> (i32, i32) {
    %c0_i32 = arith.constant 0 : i32
    %c0_i32_0 = arith.constant 0 : i32
    %c0_i32_1 = arith.constant 0 : i32
    return %c0_i32, %c0_i32_0 : i32, i32
  }
  func.func @transform_7(%arg0: i32) -> (i32, i32) {
    %c0_i32 = arith.constant 0 : i32
    %c0_i32_0 = arith.constant 0 : i32
    %c0_i32_1 = arith.constant 0 : i32
    return %c0_i32, %c0_i32_0 : i32, i32
  }
  func.func @transform_8(%arg0: i32) -> (i32, i32) {
    %c0_i32 = arith.constant 0 : i32
    %c0_i32_0 = arith.constant 0 : i32
    %c0_i32_1 = arith.constant 0 : i32
    return %c0_i32, %c0_i32_0 : i32, i32
  }
  func.func @transform_9(%arg0: i32) -> (i32, i32) {
    %c0_i32 = arith.constant 0 : i32
    %c0_i32_0 = arith.constant 0 : i32
    %c0_i32_1 = arith.constant 0 : i32
    return %c0_i32, %c0_i32_0 : i32, i32
  }
  func.func @transform_10(%arg0: i32) -> (i32, i32) {
    %c0_i32 = arith.constant 0 : i32
    %c0_i32_0 = arith.constant 0 : i32
    %c0_i32_1 = arith.constant 0 : i32
    return %c0_i32, %c0_i32_0 : i32, i32
  }
  func.func @transform_11(%arg0: i32) -> (i32, i32) {
    %c0_i32 = arith.constant 0 : i32
    %c0_i32_0 = arith.constant 0 : i32
    %c0_i32_1 = arith.constant 0 : i32
    return %c0_i32, %c0_i32_0 : i32, i32
  }
  func.func @transform_12(%arg0: i32) -> (i32, i32) {
    %c0_i32 = arith.constant 0 : i32
    %c0_i32_0 = arith.constant 0 : i32
    %c0_i32_1 = arith.constant 0 : i32
    return %c0_i32, %c0_i32_0 : i32, i32
  }
  func.func @transform_13(%arg0: i32) -> (i32, i32) {
    %c0_i32 = arith.constant 0 : i32
    %c0_i32_0 = arith.constant 0 : i32
    %c0_i32_1 = arith.constant 0 : i32
    return %c0_i32, %c0_i32_0 : i32, i32
  }
  func.func @transform_14(%arg0: i32) -> (i32, i32) {
    %c0_i32 = arith.constant 0 : i32
    %c0_i32_0 = arith.constant 0 : i32
    %c0_i32_1 = arith.constant 0 : i32
    return %c0_i32, %c0_i32_0 : i32, i32
  }
  func.func @transform_15(%arg0: i32) -> (i32, i32) {
    %c0_i32 = arith.constant 0 : i32
    %c0_i32_0 = arith.constant 0 : i32
    %c0_i32_1 = arith.constant 0 : i32
    return %c0_i32, %c0_i32_0 : i32, i32
  }
  func.func @transform_16(%arg0: i32) -> (i32, i32) {
    %c0_i32 = arith.constant 0 : i32
    %c0_i32_0 = arith.constant 0 : i32
    %c0_i32_1 = arith.constant 0 : i32
    return %c0_i32, %c0_i32_0 : i32, i32
  }
  func.func @transform_17(%arg0: i32) -> (i32, i32) {
    %c0_i32 = arith.constant 0 : i32
    %c0_i32_0 = arith.constant 0 : i32
    %c0_i32_1 = arith.constant 0 : i32
    return %c0_i32, %c0_i32_0 : i32, i32
  }
  func.func @transform_18(%arg0: i32) -> (i32, i32) {
    %c0_i32 = arith.constant 0 : i32
    %c0_i32_0 = arith.constant 0 : i32
    return %arg0, %c0_i32 : i32, i32
  }
  func.func @transform_19(%arg0: i32) -> (i32, i32) {
    %c0_i32 = arith.constant 0 : i32
    %c0_i32_0 = arith.constant 0 : i32
    return %arg0, %c0_i32 : i32, i32
  }
}

</mosaic_0001>

<llo_original>
// kernel: vae_forward.1
$region0: #{vae_forward.1}
  #allocation0 [shape = 'u32[]', space=smem, size = 0x4, offset = 0x4, fixed_abs, tag = 'smem constant byte address 0x4 - core index']
  #allocation1 [shape = 'u32[144,128]{1,0:T(1,128)}', space=vmem, size = 0x12000, scoped, tag = 'internal scratch']
  %s0 = inlined_call_operand.vmem [shape: bf16[64,784], index: 0, kind: input, shape index: {}]
  %s1 = inlined_call_operand.vmem [shape: f32[64,8], index: 1, kind: input, shape index: {}]
  %s2 = inlined_call_operand.vmem [shape: bf16[784,128], index: 2, kind: input, shape index: {}]
  %s3 = inlined_call_operand.vmem [shape: f32[1,128], index: 3, kind: input, shape index: {}]
  %s4 = inlined_call_operand.vmem [shape: bf16[128,64], index: 4, kind: input, shape index: {}]
  %s5 = inlined_call_operand.vmem [shape: f32[1,64], index: 5, kind: input, shape index: {}]
  %s6 = inlined_call_operand.vmem [shape: bf16[64,32], index: 6, kind: input, shape index: {}]
  %s7 = inlined_call_operand.vmem [shape: f32[1,32], index: 7, kind: input, shape index: {}]
  %s8 = inlined_call_operand.vmem [shape: bf16[32,16], index: 8, kind: input, shape index: {}]
  %s9 = inlined_call_operand.vmem [shape: f32[1,16], index: 9, kind: input, shape index: {}]
  %s10 = inlined_call_operand.vmem [shape: bf16[8,32], index: 10, kind: input, shape index: {}]
  %s11 = inlined_call_operand.vmem [shape: f32[1,32], index: 11, kind: input, shape index: {}]
  %s12 = inlined_call_operand.vmem [shape: bf16[32,64], index: 12, kind: input, shape index: {}]
  %s13 = inlined_call_operand.vmem [shape: f32[1,64], index: 13, kind: input, shape index: {}]
  %s14 = inlined_call_operand.vmem [shape: bf16[64,128], index: 14, kind: input, shape index: {}]
  %s15 = inlined_call_operand.vmem [shape: f32[1,128], index: 15, kind: input, shape index: {}]
  %s16 = inlined_call_operand.vmem [shape: bf16[128,784], index: 16, kind: input, shape index: {}]
  %s17 = inlined_call_operand.vmem [shape: f32[1,784], index: 17, kind: input, shape index: {}]
  %s18 = inlined_call_operand.hbm [shape: bf16[64,784], index: 18, kind: output, shape index: {0}]
  %s19 = inlined_call_operand.vmem [shape: f32[64,1], index: 19, kind: output, shape index: {1}]
  %20 = xla_tuple %s18, %s19
  %s21 = sld [smem:[#allocation0]]
  $region113: #{vae_forward.1} parent=0
    _
  %s23 = ssub.s32 1, %s21
  %s24 = scalar_select 0, %s23, %s21
  $region1: #{vae_forward.1} parent=0
    #allocation2 [shape = 'u8[114688]{0}', space=vmem, size = 0x1c000, scoped, tag = 'output window, operand 0']
    #allocation3 [shape = 's32[2]{0}', space=sflag, size = 0x8, scoped, tag = 'scoped memory for vae_forward.1']
    %25 = vsyncpa [#allocation3], 0
    %s26 = scalar_lea.sflag [#allocation3], 1
    %27 = vsyncpa %s26, 0
    loop: start=0, step=1, limit=4
    $region2: #{vae_forward.1} parent=1 // loop_pre_header
      _
    $region3: #{vae_forward.1} parent=1 // loop_header
      %s29 = sphi 0, %s33
      %p30 = scmp.ge.s32.totalorder %s29, 4
      %s39 = sphi 0, %s41
      %s42 = sphi 0, %s39
      %s43 = sphi 0, %s42
      %s59 = sphi 0, %s43
      %s65 = sphi 0, %s67
      %s68 = sphi 0, %s65
      %s69 = sphi 0, %s68
      %s85 = sphi 0, %s69
      %s89 = sphi 0, %s89
      %s91 = sphi 0, %s89
      %s92 = sphi 0, %s91
      %s106 = sphi 0, %s92
      %s110 = sphi 0, %s110
      %s112 = sphi 0, %s110
      %s113 = sphi 0, %s112
      %s127 = sphi 0, %s113
      %s131 = sphi 0, %s131
      %s133 = sphi 0, %s131
      %s134 = sphi 0, %s133
      %s148 = sphi 0, %s134
      %s152 = sphi 0, %s152
      %s154 = sphi 0, %s152
      %s155 = sphi 0, %s154
      %s169 = sphi 0, %s155
      %s173 = sphi 0, %s173
      %s175 = sphi 0, %s173
      %s176 = sphi 0, %s175
      %s190 = sphi 0, %s176
      %s194 = sphi 0, %s194
      %s196 = sphi 0, %s194
      %s197 = sphi 0, %s196
      %s211 = sphi 0, %s197
      %s215 = sphi 0, %s215
      %s217 = sphi 0, %s215
      %s218 = sphi 0, %s217
      %s232 = sphi 0, %s218
      %s236 = sphi 0, %s236
      %s238 = sphi 0, %s236
      %s239 = sphi 0, %s238
      %s253 = sphi 0, %s239
      %s257 = sphi 0, %s257
      %s259 = sphi 0, %s257
      %s260 = sphi 0, %s259
      %s274 = sphi 0, %s260
      %s278 = sphi 0, %s278
      %s280 = sphi 0, %s278
      %s281 = sphi 0, %s280
      %s295 = sphi 0, %s281
      %s299 = sphi 0, %s299
      %s301 = sphi 0, %s299
      %s302 = sphi 0, %s301
      %s316 = sphi 0, %s302
      %s320 = sphi 0, %s320
      %s322 = sphi 0, %s320
      %s323 = sphi 0, %s322
      %s337 = sphi 0, %s323
      %s341 = sphi 0, %s341
      %s343 = sphi 0, %s341
      %s344 = sphi 0, %s343
      %s358 = sphi 0, %s344
      %s362 = sphi 0, %s362
      %s364 = sphi 0, %s362
      %s365 = sphi 0, %s364
      %s379 = sphi 0, %s365
      %s383 = sphi 0, %s383
      %s385 = sphi 0, %s383
      %s386 = sphi 0, %s385
      %s400 = sphi 0, %s386
      %s404 = sphi 0, %s404
      %s406 = sphi 0, %s404
      %s407 = sphi 0, %s406
      %s421 = sphi 0, %s407
      %s427 = sphi 0, %s429
      %s430 = sphi 0, %s427
      %s431 = sphi 0, %s430
      %s447 = sphi 0, %s431
      %s453 = sphi 0, %s455
      %s456 = sphi 0, %s453
      %s457 = sphi 0, %s456
      %s473 = sphi 0, %s457
    $region4: #{vae_forward.1} parent=1 // loop_header_branch
      %32 = sbr.rel (%p30) target = $region8
    $region5: #{vae_forward.1} parent=1 // loop_body
      %s34 = ssub.s32 %s29, 1
      %s35 = ssub.s32 %s29, 2
      %s36 = sadd.s32 %s29, 1
      %s37 = ssub.s32 %s29, %s36
      %p38 = scmp.eq.s32.totalorder %s37, 0
      %s40 = sadd.s32 %s39, 1
      %s41 = scalar_select %p38, %s39, %s40
      %p44 = pneg %p38
      %p45 = scmp.eq.s32.totalorder %s29, 1
      %p46 = por %p44, %p45
      %p47 = scmp.ne.s32.totalorder %s39, %s42
      %p48 = scmp.eq.s32.totalorder %s29, 0
      %p49 = por %p47, %p48
      %p50 = scmp.ne.s32.totalorder %s39, %s42
      %p51 = scmp.eq.s32.totalorder %s34, 1
      %p52 = por %p50, %p51
      %p53 = scmp.ne.s32.totalorder %s42, %s43
      %p54 = scmp.eq.s32.totalorder %s34, 0
      %p55 = por %p53, %p54
      %p56 = scmp.ne.s32.totalorder %s42, %s43
      %p57 = scmp.eq.s32.totalorder %s35, 1
      %p58 = por %p56, %p57
      %p60 = scmp.ne.s32.totalorder %s43, %s59
      %p61 = scmp.eq.s32.totalorder %s35, 0
      %p62 = por %p60, %p61
      %s63 = ssub.s32 %s29, %s36
      %p64 = scmp.eq.s32.totalorder %s63, 0
      %s66 = sadd.s32 %s65, 1
      %s67 = scalar_select %p64, %s65, %s66
      %p70 = pneg %p64
      %p71 = scmp.eq.s32.totalorder %s29, 1
      %p72 = por %p70, %p71
      %p73 = scmp.ne.s32.totalorder %s65, %s68
      %p74 = scmp.eq.s32.totalorder %s29, 0
      %p75 = por %p73, %p74
      %p76 = scmp.ne.s32.totalorder %s65, %s68
      %p77 = scmp.eq.s32.totalorder %s34, 1
      %p78 = por %p76, %p77
      %p79 = scmp.ne.s32.totalorder %s68, %s69
      %p80 = scmp.eq.s32.totalorder %s34, 0
      %p81 = por %p79, %p80
      %p82 = scmp.ne.s32.totalorder %s68, %s69
      %p83 = scmp.eq.s32.totalorder %s35, 1
      %p84 = por %p82, %p83
      %p86 = scmp.ne.s32.totalorder %s69, %s85
      %p87 = scmp.eq.s32.totalorder %s35, 0
      %p88 = por %p86, %p87
      %s90 = sadd.s32 %s89, 1
      %p93 = scmp.eq.s32.totalorder %s29, 1
      %p94 = scmp.ne.s32.totalorder %s89, %s91
      %p95 = scmp.eq.s32.totalorder %s29, 0
      %p96 = por %p94, %p95
      %p97 = scmp.ne.s32.totalorder %s89, %s91
      %p98 = scmp.eq.s32.totalorder %s34, 1
      %p99 = por %p97, %p98
      %p100 = scmp.ne.s32.totalorder %s91, %s92
      %p101 = scmp.eq.s32.totalorder %s34, 0
      %p102 = por %p100, %p101
      %p103 = scmp.ne.s32.totalorder %s91, %s92
      %p104 = scmp.eq.s32.totalorder %s35, 1
      %p105 = por %p103, %p104
      %p107 = scmp.ne.s32.totalorder %s92, %s106
      %p108 = scmp.eq.s32.totalorder %s35, 0
      %p109 = por %p107, %p108
      %s111 = sadd.s32 %s110, 1
      %p114 = scmp.eq.s32.totalorder %s29, 1
      %p115 = scmp.ne.s32.totalorder %s110, %s112
      %p116 = scmp.eq.s32.totalorder %s29, 0
      %p117 = por %p115, %p116
      %p118 = scmp.ne.s32.totalorder %s110, %s112
      %p119 = scmp.eq.s32.totalorder %s34, 1
      %p120 = por %p118, %p119
      %p121 = scmp.ne.s32.totalorder %s112, %s113
      %p122 = scmp.eq.s32.totalorder %s34, 0
      %p123 = por %p121, %p122
      %p124 = scmp.ne.s32.totalorder %s112, %s113
      %p125 = scmp.eq.s32.totalorder %s35, 1
      %p126 = por %p124, %p125
      %p128 = scmp.ne.s32.totalorder %s113, %s127
      %p129 = scmp.eq.s32.totalorder %s35, 0
      %p130 = por %p128, %p129
      %s132 = sadd.s32 %s131, 1
      %p135 = scmp.eq.s32.totalorder %s29, 1
      %p136 = scmp.ne.s32.totalorder %s131, %s133
      %p137 = scmp.eq.s32.totalorder %s29, 0
      %p138 = por %p136, %p137
      %p139 = scmp.ne.s32.totalorder %s131, %s133
      %p140 = scmp.eq.s32.totalorder %s34, 1
      %p141 = por %p139, %p140
      %p142 = scmp.ne.s32.totalorder %s133, %s134
      %p143 = scmp.eq.s32.totalorder %s34, 0
      %p144 = por %p142, %p143
      %p145 = scmp.ne.s32.totalorder %s133, %s134
      %p146 = scmp.eq.s32.totalorder %s35, 1
      %p147 = por %p145, %p146
      %p149 = scmp.ne.s32.totalorder %s134, %s148
      %p150 = scmp.eq.s32.totalorder %s35, 0
      %p151 = por %p149, %p150
      %s153 = sadd.s32 %s152, 1
      %p156 = scmp.eq.s32.totalorder %s29, 1
      %p157 = scmp.ne.s32.totalorder %s152, %s154
      %p158 = scmp.eq.s32.totalorder %s29, 0
      %p159 = por %p157, %p158
      %p160 = scmp.ne.s32.totalorder %s152, %s154
      %p161 = scmp.eq.s32.totalorder %s34, 1
      %p162 = por %p160, %p161
      %p163 = scmp.ne.s32.totalorder %s154, %s155
      %p164 = scmp.eq.s32.totalorder %s34, 0
      %p165 = por %p163, %p164
      %p166 = scmp.ne.s32.totalorder %s154, %s155
      %p167 = scmp.eq.s32.totalorder %s35, 1
      %p168 = por %p166, %p167
      %p170 = scmp.ne.s32.totalorder %s155, %s169
      %p171 = scmp.eq.s32.totalorder %s35, 0
      %p172 = por %p170, %p171
      %s174 = sadd.s32 %s173, 1
      %p177 = scmp.eq.s32.totalorder %s29, 1
      %p178 = scmp.ne.s32.totalorder %s173, %s175
      %p179 = scmp.eq.s32.totalorder %s29, 0
      %p180 = por %p178, %p179
      %p181 = scmp.ne.s32.totalorder %s173, %s175
      %p182 = scmp.eq.s32.totalorder %s34, 1
      %p183 = por %p181, %p182
      %p184 = scmp.ne.s32.totalorder %s175, %s176
      %p185 = scmp.eq.s32.totalorder %s34, 0
      %p186 = por %p184, %p185
      %p187 = scmp.ne.s32.totalorder %s175, %s176
      %p188 = scmp.eq.s32.totalorder %s35, 1
      %p189 = por %p187, %p188
      %p191 = scmp.ne.s32.totalorder %s176, %s190
      %p192 = scmp.eq.s32.totalorder %s35, 0
      %p193 = por %p191, %p192
      %s195 = sadd.s32 %s194, 1
      %p198 = scmp.eq.s32.totalorder %s29, 1
      %p199 = scmp.ne.s32.totalorder %s194, %s196
      %p200 = scmp.eq.s32.totalorder %s29, 0
      %p201 = por %p199, %p200
      %p202 = scmp.ne.s32.totalorder %s194, %s196
      %p203 = scmp.eq.s32.totalorder %s34, 1
      %p204 = por %p202, %p203
      %p205 = scmp.ne.s32.totalorder %s196, %s197
      %p206 = scmp.eq.s32.totalorder %s34, 0
      %p207 = por %p205, %p206
      %p208 = scmp.ne.s32.totalorder %s196, %s197
      %p209 = scmp.eq.s32.totalorder %s35, 1
      %p210 = por %p208, %p209
      %p212 = scmp.ne.s32.totalorder %s197, %s211
      %p213 = scmp.eq.s32.totalorder %s35, 0
      %p214 = por %p212, %p213
      %s216 = sadd.s32 %s215, 1
      %p219 = scmp.eq.s32.totalorder %s29, 1
      %p220 = scmp.ne.s32.totalorder %s215, %s217
      %p221 = scmp.eq.s32.totalorder %s29, 0
      %p222 = por %p220, %p221
      %p223 = scmp.ne.s32.totalorder %s215, %s217
      %p224 = scmp.eq.s32.totalorder %s34, 1
      %p225 = por %p223, %p224
      %p226 = scmp.ne.s32.totalorder %s217, %s218
      %p227 = scmp.eq.s32.totalorder %s34, 0
      %p228 = por %p226, %p227
      %p229 = scmp.ne.s32.totalorder %s217, %s218
      %p230 = scmp.eq.s32.totalorder %s35, 1
      %p231 = por %p229, %p230
      %p233 = scmp.ne.s32.totalorder %s218, %s232
      %p234 = scmp.eq.s32.totalorder %s35, 0
      %p235 = por %p233, %p234
      %s237 = sadd.s32 %s236, 1
      %p240 = scmp.eq.s32.totalorder %s29, 1
      %p241 = scmp.ne.s32.totalorder %s236, %s238
      %p242 = scmp.eq.s32.totalorder %s29, 0
      %p243 = por %p241, %p242
      %p244 = scmp.ne.s32.totalorder %s236, %s238
      %p245 = scmp.eq.s32.totalorder %s34, 1
      %p246 = por %p244, %p245
      %p247 = scmp.ne.s32.totalorder %s238, %s239
      %p248 = scmp.eq.s32.totalorder %s34, 0
      %p249 = por %p247, %p248
      %p250 = scmp.ne.s32.totalorder %s238, %s239
      %p251 = scmp.eq.s32.totalorder %s35, 1
      %p252 = por %p250, %p251
      %p254 = scmp.ne.s32.totalorder %s239, %s253
      %p255 = scmp.eq.s32.totalorder %s35, 0
      %p256 = por %p254, %p255
      %s258 = sadd.s32 %s257, 1
      %p261 = scmp.eq.s32.totalorder %s29, 1
      %p262 = scmp.ne.s32.totalorder %s257, %s259
      %p263 = scmp.eq.s32.totalorder %s29, 0
      %p264 = por %p262, %p263
      %p265 = scmp.ne.s32.totalorder %s257, %s259
      %p266 = scmp.eq.s32.totalorder %s34, 1
      %p267 = por %p265, %p266
      %p268 = scmp.ne.s32.totalorder %s259, %s260
      %p269 = scmp.eq.s32.totalorder %s34, 0
      %p270 = por %p268, %p269
      %p271 = scmp.ne.s32.totalorder %s259, %s260
      %p272 = scmp.eq.s32.totalorder %s35, 1
      %p273 = por %p271, %p272
      %p275 = scmp.ne.s32.totalorder %s260, %s274
      %p276 = scmp.eq.s32.totalorder %s35, 0
      %p277 = por %p275, %p276
      %s279 = sadd.s32 %s278, 1
      %p282 = scmp.eq.s32.totalorder %s29, 1
      %p283 = scmp.ne.s32.totalorder %s278, %s280
      %p284 = scmp.eq.s32.totalorder %s29, 0
      %p285 = por %p283, %p284
      %p286 = scmp.ne.s32.totalorder %s278, %s280
      %p287 = scmp.eq.s32.totalorder %s34, 1
      %p288 = por %p286, %p287
      %p289 = scmp.ne.s32.totalorder %s280, %s281
      %p290 = scmp.eq.s32.totalorder %s34, 0
      %p291 = por %p289, %p290
      %p292 = scmp.ne.s32.totalorder %s280, %s281
      %p293 = scmp.eq.s32.totalorder %s35, 1
      %p294 = por %p292, %p293
      %p296 = scmp.ne.s32.totalorder %s281, %s295
      %p297 = scmp.eq.s32.totalorder %s35, 0
      %p298 = por %p296, %p297
      %s300 = sadd.s32 %s299, 1
      %p303 = scmp.eq.s32.totalorder %s29, 1
      %p304 = scmp.ne.s32.totalorder %s299, %s301
      %p305 = scmp.eq.s32.totalorder %s29, 0
      %p306 = por %p304, %p305
      %p307 = scmp.ne.s32.totalorder %s299, %s301
      %p308 = scmp.eq.s32.totalorder %s34, 1
      %p309 = por %p307, %p308
      %p310 = scmp.ne.s32.totalorder %s301, %s302
      %p311 = scmp.eq.s32.totalorder %s34, 0
      %p312 = por %p310, %p311
      %p313 = scmp.ne.s32.totalorder %s301, %s302
      %p314 = scmp.eq.s32.totalorder %s35, 1
      %p315 = por %p313, %p314
      %p317 = scmp.ne.s32.totalorder %s302, %s316
      %p318 = scmp.eq.s32.totalorder %s35, 0
      %p319 = por %p317, %p318
      %s321 = sadd.s32 %s320, 1
      %p324 = scmp.eq.s32.totalorder %s29, 1
      %p325 = scmp.ne.s32.totalorder %s320, %s322
      %p326 = scmp.eq.s32.totalorder %s29, 0
      %p327 = por %p325, %p326
      %p328 = scmp.ne.s32.totalorder %s320, %s322
      %p329 = scmp.eq.s32.totalorder %s34, 1
      %p330 = por %p328, %p329
      %p331 = scmp.ne.s32.totalorder %s322, %s323
      %p332 = scmp.eq.s32.totalorder %s34, 0
      %p333 = por %p331, %p332
      %p334 = scmp.ne.s32.totalorder %s322, %s323
      %p335 = scmp.eq.s32.totalorder %s35, 1
      %p336 = por %p334, %p335
      %p338 = scmp.ne.s32.totalorder %s323, %s337
      %p339 = scmp.eq.s32.totalorder %s35, 0
      %p340 = por %p338, %p339
      %s342 = sadd.s32 %s341, 1
      %p345 = scmp.eq.s32.totalorder %s29, 1
      %p346 = scmp.ne.s32.totalorder %s341, %s343
      %p347 = scmp.eq.s32.totalorder %s29, 0
      %p348 = por %p346, %p347
      %p349 = scmp.ne.s32.totalorder %s341, %s343
      %p350 = scmp.eq.s32.totalorder %s34, 1
      %p351 = por %p349, %p350
      %p352 = scmp.ne.s32.totalorder %s343, %s344
      %p353 = scmp.eq.s32.totalorder %s34, 0
      %p354 = por %p352, %p353
      %p355 = scmp.ne.s32.totalorder %s343, %s344
      %p356 = scmp.eq.s32.totalorder %s35, 1
      %p357 = por %p355, %p356
      %p359 = scmp.ne.s32.totalorder %s344, %s358
      %p360 = scmp.eq.s32.totalorder %s35, 0
      %p361 = por %p359, %p360
      %s363 = sadd.s32 %s362, 1
      %p366 = scmp.eq.s32.totalorder %s29, 1
      %p367 = scmp.ne.s32.totalorder %s362, %s364
      %p368 = scmp.eq.s32.totalorder %s29, 0
      %p369 = por %p367, %p368
      %p370 = scmp.ne.s32.totalorder %s362, %s364
      %p371 = scmp.eq.s32.totalorder %s34, 1
      %p372 = por %p370, %p371
      %p373 = scmp.ne.s32.totalorder %s364, %s365
      %p374 = scmp.eq.s32.totalorder %s34, 0
      %p375 = por %p373, %p374
      %p376 = scmp.ne.s32.totalorder %s364, %s365
      %p377 = scmp.eq.s32.totalorder %s35, 1
      %p378 = por %p376, %p377
      %p380 = scmp.ne.s32.totalorder %s365, %s379
      %p381 = scmp.eq.s32.totalorder %s35, 0
      %p382 = por %p380, %p381
      %s384 = sadd.s32 %s383, 1
      %p387 = scmp.eq.s32.totalorder %s29, 1
      %p388 = scmp.ne.s32.totalorder %s383, %s385
      %p389 = scmp.eq.s32.totalorder %s29, 0
      %p390 = por %p388, %p389
      %p391 = scmp.ne.s32.totalorder %s383, %s385
      %p392 = scmp.eq.s32.totalorder %s34, 1
      %p393 = por %p391, %p392
      %p394 = scmp.ne.s32.totalorder %s385, %s386
      %p395 = scmp.eq.s32.totalorder %s34, 0
      %p396 = por %p394, %p395
      %p397 = scmp.ne.s32.totalorder %s385, %s386
      %p398 = scmp.eq.s32.totalorder %s35, 1
      %p399 = por %p397, %p398
      %p401 = scmp.ne.s32.totalorder %s386, %s400
      %p402 = scmp.eq.s32.totalorder %s35, 0
      %p403 = por %p401, %p402
      %s405 = sadd.s32 %s404, 1
      %p408 = scmp.eq.s32.totalorder %s29, 1
      %p409 = scmp.ne.s32.totalorder %s404, %s406
      %p410 = scmp.eq.s32.totalorder %s29, 0
      %p411 = por %p409, %p410
      %p412 = scmp.ne.s32.totalorder %s404, %s406
      %p413 = scmp.eq.s32.totalorder %s34, 1
      %p414 = por %p412, %p413
      %p415 = scmp.ne.s32.totalorder %s406, %s407
      %p416 = scmp.eq.s32.totalorder %s34, 0
      %p417 = por %p415, %p416
      %p418 = scmp.ne.s32.totalorder %s406, %s407
      %p419 = scmp.eq.s32.totalorder %s35, 1
      %p420 = por %p418, %p419
      %p422 = scmp.ne.s32.totalorder %s407, %s421
      %p423 = scmp.eq.s32.totalorder %s35, 0
      %p424 = por %p422, %p423
      %s425 = ssub.s32 %s29, %s36
      %p426 = scmp.eq.s32.totalorder %s425, 0
      %s428 = sadd.s32 %s427, 1
      %s429 = scalar_select %p426, %s427, %s428
      %p432 = pneg %p426
      %p433 = scmp.eq.s32.totalorder %s29, 1
      %p434 = por %p432, %p433
      %p435 = scmp.ne.s32.totalorder %s427, %s430
      %p436 = scmp.eq.s32.totalorder %s29, 0
      %p437 = por %p435, %p436
      %p438 = scmp.ne.s32.totalorder %s427, %s430
      %p439 = scmp.eq.s32.totalorder %s34, 1
      %p440 = por %p438, %p439
      %p441 = scmp.ne.s32.totalorder %s430, %s431
      %p442 = scmp.eq.s32.totalorder %s34, 0
      %p443 = por %p441, %p442
      %p444 = scmp.ne.s32.totalorder %s430, %s431
      %p445 = scmp.eq.s32.totalorder %s35, 1
      %p446 = por %p444, %p445
      %p448 = scmp.ne.s32.totalorder %s431, %s447
      %p449 = scmp.eq.s32.totalorder %s35, 0
      %p450 = por %p448, %p449
      %s451 = ssub.s32 %s29, %s36
      %p452 = scmp.eq.s32.totalorder %s451, 0
      %s454 = sadd.s32 %s453, 1
      %s455 = scalar_select %p452, %s453, %s454
      %p458 = pneg %p452
      %p459 = scmp.eq.s32.totalorder %s29, 1
      %p460 = por %p458, %p459
      %p461 = scmp.ne.s32.totalorder %s453, %s456
      %p462 = scmp.eq.s32.totalorder %s29, 0
      %p463 = por %p461, %p462
      %p464 = scmp.ne.s32.totalorder %s453, %s456
      %p465 = scmp.eq.s32.totalorder %s34, 1
      %p466 = por %p464, %p465
      %p467 = scmp.ne.s32.totalorder %s456, %s457
      %p468 = scmp.eq.s32.totalorder %s34, 0
      %p469 = por %p467, %p468
      %p470 = scmp.ne.s32.totalorder %s456, %s457
      %p471 = scmp.eq.s32.totalorder %s35, 1
      %p472 = por %p470, %p471
      %p474 = scmp.ne.s32.totalorder %s457, %s473
      %p475 = scmp.eq.s32.totalorder %s35, 0
      %p476 = por %p474, %p475
      %p477 = scmp.le.s32.totalorder 1, %s29
      %p478 = scmp.lt.s32.totalorder %s29, 3
      %p479 = pnand %p477, %p478
      %p480 = pneg %p479
      // Predicated region
      $region9: #{vae_forward.1} parent=5 // pred_check
        _
      $region10: #{vae_forward.1} parent=5 // pred_check_branch
        %482 = sbr.rel (%p479) target = $region12
      $region11: #{vae_forward.1} parent=5 // pred_region
        %s483 = ssub.s32 %s29, 1
        // Predicated region
        $region13: #{vae_forward.1} parent=11 // pred_check
          %p484 = pneg %p102
        $region14: #{vae_forward.1} parent=11 // pred_check_branch
          %486 = sbr.rel (%p484) target = $region16
        $region15: #{vae_forward.1} parent=11 // pred_region
          _
        $region16: #{vae_forward.1} parent=11 // pred_fallthru
          _
        // Predicated region
        $region17: #{vae_forward.1} parent=11 // pred_check
          %p487 = pneg %p123
        $region18: #{vae_forward.1} parent=11 // pred_check_branch
          %489 = sbr.rel (%p487) target = $region20
        $region19: #{vae_forward.1} parent=11 // pred_region
          _
        $region20: #{vae_forward.1} parent=11 // pred_fallthru
          _
        // Predicated region
        $region21: #{vae_forward.1} parent=11 // pred_check
          %p490 = pneg %p144
        $region22: #{vae_forward.1} parent=11 // pred_check_branch
          %492 = sbr.rel (%p490) target = $region24
        $region23: #{vae_forward.1} parent=11 // pred_region
          _
        $region24: #{vae_forward.1} parent=11 // pred_fallthru
          _
        // Predicated region
        $region25: #{vae_forward.1} parent=11 // pred_check
          %p493 = pneg %p165
        $region26: #{vae_forward.1} parent=11 // pred_check_branch
          %495 = sbr.rel (%p493) target = $region28
        $region27: #{vae_forward.1} parent=11 // pred_region
          _
        $region28: #{vae_forward.1} parent=11 // pred_fallthru
          _
        // Predicated region
        $region29: #{vae_forward.1} parent=11 // pred_check
          %p496 = pneg %p186
        $region30: #{vae_forward.1} parent=11 // pred_check_branch
          %498 = sbr.rel (%p496) target = $region32
        $region31: #{vae_forward.1} parent=11 // pred_region
          _
        $region32: #{vae_forward.1} parent=11 // pred_fallthru
          _
        // Predicated region
        $region33: #{vae_forward.1} parent=11 // pred_check
          %p499 = pneg %p207
        $region34: #{vae_forward.1} parent=11 // pred_check_branch
          %501 = sbr.rel (%p499) target = $region36
        $region35: #{vae_forward.1} parent=11 // pred_region
          _
        $region36: #{vae_forward.1} parent=11 // pred_fallthru
          _
        // Predicated region
        $region37: #{vae_forward.1} parent=11 // pred_check
          %p502 = pneg %p228
        $region38: #{vae_forward.1} parent=11 // pred_check_branch
          %504 = sbr.rel (%p502) target = $region40
        $region39: #{vae_forward.1} parent=11 // pred_region
          _
        $region40: #{vae_forward.1} parent=11 // pred_fallthru
          _
        // Predicated region
        $region41: #{vae_forward.1} parent=11 // pred_check
          %p505 = pneg %p249
        $region42: #{vae_forward.1} parent=11 // pred_check_branch
          %507 = sbr.rel (%p505) target = $region44
        $region43: #{vae_forward.1} parent=11 // pred_region
          _
        $region44: #{vae_forward.1} parent=11 // pred_fallthru
          _
        // Predicated region
        $region45: #{vae_forward.1} parent=11 // pred_check
          %p508 = pneg %p270
        $region46: #{vae_forward.1} parent=11 // pred_check_branch
          %510 = sbr.rel (%p508) target = $region48
        $region47: #{vae_forward.1} parent=11 // pred_region
          _
        $region48: #{vae_forward.1} parent=11 // pred_fallthru
          _
        // Predicated region
        $region49: #{vae_forward.1} parent=11 // pred_check
          %p511 = pneg %p291
        $region50: #{vae_forward.1} parent=11 // pred_check_branch
          %513 = sbr.rel (%p511) target = $region52
        $region51: #{vae_forward.1} parent=11 // pred_region
          _
        $region52: #{vae_forward.1} parent=11 // pred_fallthru
          _
        // Predicated region
        $region53: #{vae_forward.1} parent=11 // pred_check
          %p514 = pneg %p312
        $region54: #{vae_forward.1} parent=11 // pred_check_branch
          %516 = sbr.rel (%p514) target = $region56
        $region55: #{vae_forward.1} parent=11 // pred_region
          _
        $region56: #{vae_forward.1} parent=11 // pred_fallthru
          _
        // Predicated region
        $region57: #{vae_forward.1} parent=11 // pred_check
          %p517 = pneg %p333
        $region58: #{vae_forward.1} parent=11 // pred_check_branch
          %519 = sbr.rel (%p517) target = $region60
        $region59: #{vae_forward.1} parent=11 // pred_region
          _
        $region60: #{vae_forward.1} parent=11 // pred_fallthru
          _
        // Predicated region
        $region61: #{vae_forward.1} parent=11 // pred_check
          %p520 = pneg %p354
        $region62: #{vae_forward.1} parent=11 // pred_check_branch
          %522 = sbr.rel (%p520) target = $region64
        $region63: #{vae_forward.1} parent=11 // pred_region
          _
        $region64: #{vae_forward.1} parent=11 // pred_fallthru
          _
        // Predicated region
        $region65: #{vae_forward.1} parent=11 // pred_check
          %p523 = pneg %p375
        $region66: #{vae_forward.1} parent=11 // pred_check_branch
          %525 = sbr.rel (%p523) target = $region68
        $region67: #{vae_forward.1} parent=11 // pred_region
          _
        $region68: #{vae_forward.1} parent=11 // pred_fallthru
          _
        // Predicated region
        $region69: #{vae_forward.1} parent=11 // pred_check
          %p526 = pneg %p396
        $region70: #{vae_forward.1} parent=11 // pred_check_branch
          %528 = sbr.rel (%p526) target = $region72
        $region71: #{vae_forward.1} parent=11 // pred_region
          _
        $region72: #{vae_forward.1} parent=11 // pred_fallthru
          _
        // Predicated region
        $region73: #{vae_forward.1} parent=11 // pred_check
          %p529 = pneg %p417
        $region74: #{vae_forward.1} parent=11 // pred_check_branch
          %531 = sbr.rel (%p529) target = $region76
        $region75: #{vae_forward.1} parent=11 // pred_region
          _
        $region76: #{vae_forward.1} parent=11 // pred_fallthru
          _
      $region12: #{vae_forward.1} parent=5 // pred_fallthru
        _
      %p532 = scmp.lt.s32.totalorder %s29, 2
      // Predicated region
      $region77: #{vae_forward.1} parent=5 // pred_check
        %p533 = pneg %p532
      $region78: #{vae_forward.1} parent=5 // pred_check_branch
        %535 = sbr.rel (%p533) target = $region80
      $region79: #{vae_forward.1} parent=5 // pred_region
        // Predicated region
        $region81: #{vae_forward.1} parent=79 // pred_check
          %p536 = pneg %p49
        $region82: #{vae_forward.1} parent=79 // pred_check_branch
          %538 = sbr.rel (%p536) target = $region84
        $region83: #{vae_forward.1} parent=79 // pred_region
          %s539 = smul.u32 4, %s29
          %p540 = scmp.lt.s32.totalorder %s539, 7
          %s541 = scalar_select %p540, %s539, 7
          %s542 = smul.addr %s541, 7
          %s543 = smul.addr %s542, 4
          %s544 = scalar_lea.vmem %s0, %s543
          %s545 = smul.u32 4, %s29
        $region84: #{vae_forward.1} parent=79 // pred_fallthru
          _
        // Predicated region
        $region85: #{vae_forward.1} parent=79 // pred_check
          %p546 = pneg %p75
        $region86: #{vae_forward.1} parent=79 // pred_check_branch
          %548 = sbr.rel (%p546) target = $region88
        $region87: #{vae_forward.1} parent=79 // pred_region
          %s549 = smul.u32 4, %s29
          %p550 = scmp.lt.s32.totalorder %s549, 7
          %s551 = scalar_select %p550, %s549, 7
          %s552 = smul.addr %s551, 8
          %s553 = scalar_lea.vmem %s1, %s552
          %s554 = smul.u32 4, %s29
        $region88: #{vae_forward.1} parent=79 // pred_fallthru
          _
      $region80: #{vae_forward.1} parent=5 // pred_fallthru
        _
      %p555 = scmp.le.s32.totalorder 1, %s29
      %p556 = scmp.lt.s32.totalorder %s29, 3
      %p557 = pnand %p555, %p556
      %p558 = pneg %p557
      // Predicated region
      $region89: #{vae_forward.1} parent=5 // pred_check
        _
      $region90: #{vae_forward.1} parent=5 // pred_check_branch
        %560 = sbr.rel (%p557) target = $region92
      $region91: #{vae_forward.1} parent=5 // pred_region
        %s561 = ssub.s32 %s29, 1
        %s562 = smul.u32 4, %s34
        %p563 = scmp.lt.s32.totalorder %s562, 7
        %s564 = scalar_select %p563, %s562, 7
        %s565 = smul.addr %s564, 7
        %s566 = smul.addr %s565, 4
        %s567 = scalar_lea.vmem %s0, %s566
        %p568 = pneg %p55
        %p569 = pneg %p52
        %s570 = smul.u32 4, %s34
        %p571 = scmp.lt.s32.totalorder %s570, 7
        %s572 = scalar_select %p571, %s570, 7
        %s573 = smul.addr %s572, 8
        %s574 = scalar_lea.vmem %s1, %s573
        %p575 = pneg %p81
        %p576 = pneg %p78
        %p577 = pneg %p102
        %p578 = pneg %p99
        %p579 = pneg %p123
        %p580 = pneg %p120
        %p581 = pneg %p144
        %p582 = pneg %p141
        %p583 = pneg %p165
        %p584 = pneg %p162
        %p585 = pneg %p186
        %p586 = pneg %p183
        %p587 = pneg %p207
        %p588 = pneg %p204
        %p589 = pneg %p228
        %p590 = pneg %p225
        %p591 = pneg %p249
        %p592 = pneg %p246
        %p593 = pneg %p270
        %p594 = pneg %p267
        %p595 = pneg %p291
        %p596 = pneg %p288
        %p597 = pneg %p312
        %p598 = pneg %p309
        %p599 = pneg %p333
        %p600 = pneg %p330
        %p601 = pneg %p354
        %p602 = pneg %p351
        %p603 = pneg %p375
        %p604 = pneg %p372
        %p605 = pneg %p396
        %p606 = pneg %p393
        %p607 = pneg %p417
        %p608 = pneg %p414
        %p609 = pneg %p443
        %p610 = pneg %p440
        %s611 = sand.u32 %s430, 1
        %s612 = scalar_lea.sflag [#allocation3], %s611
        %s613 = sand.u32 %s430, 1
        %s614 = smul.addr %s613, 112
        %s615 = scalar_lea.vmem [#allocation2], %s614
        %p616 = pneg %p469
        %p617 = pneg %p466
        %s618 = smul.u32 4, %s34
        %p619 = scmp.lt.s32.totalorder %s618, 7
        %s620 = scalar_select %p619, %s618, 7
        %s621 = smul.addr %s620, 8
        %s622 = scalar_lea.vmem %s19, %s621
        %s623 = smul.u32 4, %s34
        %p624 = scmp.lt.s32.totalorder %s623, 7
        %s625 = scalar_select %p624, %s623, 7
        %s626 = smul.addr %s625, 7
        %s627 = smul.addr %s626, 4
        %s628 = scalar_lea.vmem %s0, %s627
        %s629 = smul.u32 4, %s34
        %s630 = smul.u32 4, %s34
        %p631 = scmp.lt.s32.totalorder %s630, 7
        %s632 = scalar_select %p631, %s630, 7
        %s633 = smul.addr %s632, 8
        %s634 = scalar_lea.vmem %s1, %s633
        %s635 = smul.u32 4, %s34
        %s636 = smul.u32 4, %s34
        %s637 = smul.u32 4, %s34
        %p638 = scmp.lt.s32.totalorder %s637, 7
        %s639 = scalar_select %p638, %s637, 7
        %s640 = smul.addr %s639, 8
        %s641 = scalar_lea.vmem %s19, %s640
        %s642 = smul.u32 4, %s34
        %v644 = vld [vmem:[%s628] sm:$0xff]
        %v645 = vld [vmem:[%s628 + $0x8] sm:$0xff]
        %v646 = vld [vmem:[%s628 + $0x10] sm:$0xff]
        %v647 = vld [vmem:[%s628 + $0x18] sm:$0xf]
        %v648 = vld [vmem:[%s628 + $0x1c] sm:$0xff]
        %v649 = vld [vmem:[%s628 + $0x24] sm:$0xff]
        %v650 = vld [vmem:[%s628 + $0x2c] sm:$0xff]
        %v651 = vld [vmem:[%s628 + $0x34] sm:$0xf]
        %v652 = vld [vmem:[%s628 + $0x38] sm:$0xff]
        %v653 = vld [vmem:[%s628 + $0x40] sm:$0xff]
        %v654 = vld [vmem:[%s628 + $0x48] sm:$0xff]
        %v655 = vld [vmem:[%s628 + $0x50] sm:$0xf]
        %v656 = vld [vmem:[%s628 + $0x54] sm:$0xff]
        %v657 = vld [vmem:[%s628 + $0x5c] sm:$0xff]
        %v658 = vld [vmem:[%s628 + $0x64] sm:$0xff]
        %v659 = vld [vmem:[%s628 + $0x6c] sm:$0xf]
        %v660 = vld [vmem:[%s2] sm:$0xf]
        %v661 = vld [vmem:[%s2 + $0x4] sm:$0xf]
        %v662 = vld [vmem:[%s2 + $0x8] sm:$0xf]
        %v663 = vld [vmem:[%s2 + $0xc] sm:$0xf]
        %v664 = vld [vmem:[%s2 + $0x10] sm:$0xf]
        %v665 = vld [vmem:[%s2 + $0x14] sm:$0xf]
        %v666 = vld [vmem:[%s2 + $0x18] sm:$0xf]
        %v667 = vld [vmem:[%s2 + $0x1c] sm:$0xf]
        %v668 = vld [vmem:[%s2 + $0x20] sm:$0xf]
        %v669 = vld [vmem:[%s2 + $0x24] sm:$0xf]
        %v670 = vld [vmem:[%s2 + $0x28] sm:$0xf]
        %v671 = vld [vmem:[%s2 + $0x2c] sm:$0xf]
        %v672 = vld [vmem:[%s2 + $0x30] sm:$0xf]
        %v673 = vld [vmem:[%s2 + $0x34] sm:$0xf]
        %v674 = vld [vmem:[%s2 + $0x38] sm:$0xf]
        %v675 = vld [vmem:[%s2 + $0x3c] sm:$0xf]
        %v676 = vld [vmem:[%s2 + $0x40] sm:$0xf]
        %v677 = vld [vmem:[%s2 + $0x44] sm:$0xf]
        %v678 = vld [vmem:[%s2 + $0x48] sm:$0xf]
        %v679 = vld [vmem:[%s2 + $0x4c] sm:$0xf]
        %v680 = vld [vmem:[%s2 + $0x50] sm:$0xf]
        %v681 = vld [vmem:[%s2 + $0x54] sm:$0xf]
        %v682 = vld [vmem:[%s2 + $0x58] sm:$0xf]
        %v683 = vld [vmem:[%s2 + $0x5c] sm:$0xf]
        %v684 = vld [vmem:[%s2 + $0x60] sm:$0xf]
        %v685 = vld [vmem:[%s2 + $0x64] sm:$0xf]
        %v686 = vld [vmem:[%s2 + $0x68] sm:$0xf]
        %v687 = vld [vmem:[%s2 + $0x6c] sm:$0xf]
        %v688 = vld [vmem:[%s2 + $0x70] sm:$0xf]
        %v689 = vld [vmem:[%s2 + $0x74] sm:$0xf]
        %v690 = vld [vmem:[%s2 + $0x78] sm:$0xf]
        %v691 = vld [vmem:[%s2 + $0x7c] sm:$0xf]
        %v692 = vld [vmem:[%s2 + $0x80] sm:$0xf]
        %v693 = vld [vmem:[%s2 + $0x84] sm:$0xf]
        %v694 = vld [vmem:[%s2 + $0x88] sm:$0xf]
        %v695 = vld [vmem:[%s2 + $0x8c] sm:$0xf]
        %v696 = vld [vmem:[%s2 + $0x90] sm:$0xf]
        %v697 = vld [vmem:[%s2 + $0x94] sm:$0xf]
        %v698 = vld [vmem:[%s2 + $0x98] sm:$0xf]
        %v699 = vld [vmem:[%s2 + $0x9c] sm:$0xf]
        %v700 = vld [vmem:[%s2 + $0xa0] sm:$0xf]
        %v701 = vld [vmem:[%s2 + $0xa4] sm:$0xf]
        %v702 = vld [vmem:[%s2 + $0xa8] sm:$0xf]
        %v703 = vld [vmem:[%s2 + $0xac] sm:$0xf]
        %v704 = vld [vmem:[%s2 + $0xb0] sm:$0xf]
        %v705 = vld [vmem:[%s2 + $0xb4] sm:$0xf]
        %v706 = vld [vmem:[%s2 + $0xb8] sm:$0xf]
        %v707 = vld [vmem:[%s2 + $0xbc] sm:$0xf]
        %v708 = vld [vmem:[%s2 + $0xc0] sm:$0xf]
        %v709 = vld [vmem:[%s2 + $0xc4] sm:$0xf]
        %v710 = vld [vmem:[%s2 + $0xc8] sm:$0xf]
        %v711 = vld [vmem:[%s2 + $0xcc] sm:$0xf]
        %v712 = vld [vmem:[%s2 + $0xd0] sm:$0xf]
        %v713 = vld [vmem:[%s2 + $0xd4] sm:$0xf]
        %v714 = vld [vmem:[%s2 + $0xd8] sm:$0xf]
        %v715 = vld [vmem:[%s2 + $0xdc] sm:$0xf]
        %v716 = vld [vmem:[%s2 + $0xe0] sm:$0xf]
        %v717 = vld [vmem:[%s2 + $0xe4] sm:$0xf]
        %v718 = vld [vmem:[%s2 + $0xe8] sm:$0xf]
        %v719 = vld [vmem:[%s2 + $0xec] sm:$0xf]
        %v720 = vld [vmem:[%s2 + $0xf0] sm:$0xf]
        %v721 = vld [vmem:[%s2 + $0xf4] sm:$0xf]
        %v722 = vld [vmem:[%s2 + $0xf8] sm:$0xf]
        %v723 = vld [vmem:[%s2 + $0xfc] sm:$0xf]
        %v724 = vld [vmem:[%s2 + $0x100] sm:$0xf]
        %v725 = vld [vmem:[%s2 + $0x104] sm:$0xf]
        %v726 = vld [vmem:[%s2 + $0x108] sm:$0xf]
        %v727 = vld [vmem:[%s2 + $0x10c] sm:$0xf]
        %v728 = vld [vmem:[%s2 + $0x110] sm:$0xf]
        %v729 = vld [vmem:[%s2 + $0x114] sm:$0xf]
        %v730 = vld [vmem:[%s2 + $0x118] sm:$0xf]
        %v731 = vld [vmem:[%s2 + $0x11c] sm:$0xf]
        %v732 = vld [vmem:[%s2 + $0x120] sm:$0xf]
        %v733 = vld [vmem:[%s2 + $0x124] sm:$0xf]
        %v734 = vld [vmem:[%s2 + $0x128] sm:$0xf]
        %v735 = vld [vmem:[%s2 + $0x12c] sm:$0xf]
        %v736 = vld [vmem:[%s2 + $0x130] sm:$0xf]
        %v737 = vld [vmem:[%s2 + $0x134] sm:$0xf]
        %v738 = vld [vmem:[%s2 + $0x138] sm:$0xf]
        %v739 = vld [vmem:[%s2 + $0x13c] sm:$0xf]
        %v740 = vld [vmem:[%s2 + $0x140] sm:$0xf]
        %v741 = vld [vmem:[%s2 + $0x144] sm:$0xf]
        %v742 = vld [vmem:[%s2 + $0x148] sm:$0xf]
        %v743 = vld [vmem:[%s2 + $0x14c] sm:$0xf]
        %v744 = vld [vmem:[%s2 + $0x150] sm:$0xf]
        %v745 = vld [vmem:[%s2 + $0x154] sm:$0xf]
        %v746 = vld [vmem:[%s2 + $0x158] sm:$0xf]
        %v747 = vld [vmem:[%s2 + $0x15c] sm:$0xf]
        %v748 = vld [vmem:[%s2 + $0x160] sm:$0xf]
        %v749 = vld [vmem:[%s2 + $0x164] sm:$0xf]
        %v750 = vld [vmem:[%s2 + $0x168] sm:$0xf]
        %v751 = vld [vmem:[%s2 + $0x16c] sm:$0xf]
        %v752 = vld [vmem:[%s2 + $0x170] sm:$0xf]
        %v753 = vld [vmem:[%s2 + $0x174] sm:$0xf]
        %v754 = vld [vmem:[%s2 + $0x178] sm:$0xf]
        %v755 = vld [vmem:[%s2 + $0x17c] sm:$0xf]
        %v756 = vld [vmem:[%s2 + $0x180] sm:$0xf]
        %v757 = vld [vmem:[%s2 + $0x184] sm:$0xf]
        %v758 = vld [vmem:[%s3] sm:$0x1]
        %v760 = vlaneseq
        %v761 = vshrl.u32 %v760, 7
        %v762 = vsub.s32 0, %v761
        %v763 = vrot.slane %v758, %v762
        %v781 = vunpack.c.l.b16 %v644
        %v782 = vunpack.c.h.b16 %v644
        %v783 = vunpack.c.l.b16 %v645
        %v784 = vunpack.c.h.b16 %v645
        %v785 = vunpack.c.l.b16 %v646
        %v786 = vunpack.c.h.b16 %v646
        %v787 = vunpack.c.l.b16 %v647
        %v788 = vunpack.c.l.b16 %v648
        %v789 = vunpack.c.h.b16 %v648
        %v790 = vunpack.c.l.b16 %v649
        %v791 = vunpack.c.h.b16 %v649
        %v792 = vunpack.c.l.b16 %v650
        %v793 = vunpack.c.h.b16 %v650
        %v794 = vunpack.c.l.b16 %v651
        %v795 = vunpack.c.l.b16 %v652
        %v796 = vunpack.c.h.b16 %v652
        %v797 = vunpack.c.l.b16 %v653
        %v798 = vunpack.c.h.b16 %v653
        %v799 = vunpack.c.l.b16 %v654
        %v800 = vunpack.c.h.b16 %v654
        %v801 = vunpack.c.l.b16 %v655
        %v802 = vunpack.c.l.b16 %v656
        %v803 = vunpack.c.h.b16 %v656
        %v804 = vunpack.c.l.b16 %v657
        %v805 = vunpack.c.h.b16 %v657
        %v806 = vunpack.c.l.b16 %v658
        %v807 = vunpack.c.h.b16 %v658
        %v808 = vunpack.c.l.b16 %v659
        %v809 = vpack.c.b16 %v788, %v781
        %v810 = vpack.c.b16 %v789, %v782
        %v811 = vpack.c.b16 %v790, %v783
        %v812 = vpack.c.b16 %v791, %v784
        %v813 = vpack.c.b16 %v792, %v785
        %v814 = vpack.c.b16 %v793, %v786
        %v815 = vpack.c.b16 %v794, %v787
        %v816 = vpack.c.b16 %v802, %v795
        %v817 = vpack.c.b16 %v803, %v796
        %v818 = vpack.c.b16 %v804, %v797
        %v819 = vpack.c.b16 %v805, %v798
        %v820 = vpack.c.b16 %v806, %v799
        %v821 = vpack.c.b16 %v807, %v800
        %v822 = vpack.c.b16 %v808, %v801
        %v933 = vunpack.c.l.b16 %v660
        %v934 = vunpack.c.l.b16 %v661
        %v935 = vunpack.c.l.b16 %v662
        %v936 = vunpack.c.l.b16 %v663
        %v937 = vunpack.c.l.b16 %v664
        %v938 = vunpack.c.l.b16 %v665
        %v939 = vunpack.c.l.b16 %v666
        %v940 = vunpack.c.l.b16 %v667
        %v941 = vunpack.c.l.b16 %v668
        %v942 = vunpack.c.l.b16 %v669
        %v943 = vunpack.c.l.b16 %v670
        %v944 = vunpack.c.l.b16 %v671
        %v945 = vunpack.c.l.b16 %v672
        %v946 = vunpack.c.l.b16 %v673
        %v947 = vunpack.c.l.b16 %v674
        %v948 = vunpack.c.l.b16 %v675
        %v949 = vunpack.c.l.b16 %v676
        %v950 = vunpack.c.l.b16 %v677
        %v951 = vunpack.c.l.b16 %v678
        %v952 = vunpack.c.l.b16 %v679
        %v953 = vunpack.c.l.b16 %v680
        %v954 = vunpack.c.l.b16 %v681
        %v955 = vunpack.c.l.b16 %v682
        %v956 = vunpack.c.l.b16 %v683
        %v957 = vunpack.c.l.b16 %v684
        %v958 = vunpack.c.l.b16 %v685
        %v959 = vunpack.c.l.b16 %v686
        %v960 = vunpack.c.l.b16 %v687
        %v961 = vunpack.c.l.b16 %v688
        %v962 = vunpack.c.l.b16 %v689
        %v963 = vunpack.c.l.b16 %v690
        %v964 = vunpack.c.l.b16 %v691
        %v965 = vunpack.c.l.b16 %v692
        %v966 = vunpack.c.l.b16 %v693
        %v967 = vunpack.c.l.b16 %v694
        %v968 = vunpack.c.l.b16 %v695
        %v969 = vunpack.c.l.b16 %v696
        %v970 = vunpack.c.l.b16 %v697
        %v971 = vunpack.c.l.b16 %v698
        %v972 = vunpack.c.l.b16 %v699
        %v973 = vunpack.c.l.b16 %v700
        %v974 = vunpack.c.l.b16 %v701
        %v975 = vunpack.c.l.b16 %v702
        %v976 = vunpack.c.l.b16 %v703
        %v977 = vunpack.c.l.b16 %v704
        %v978 = vunpack.c.l.b16 %v705
        %v979 = vunpack.c.l.b16 %v706
        %v980 = vunpack.c.l.b16 %v707
        %v981 = vunpack.c.l.b16 %v708
        %v982 = vunpack.c.l.b16 %v709
        %v983 = vunpack.c.l.b16 %v710
        %v984 = vunpack.c.l.b16 %v711
        %v985 = vunpack.c.l.b16 %v712
        %v986 = vunpack.c.l.b16 %v713
        %v987 = vunpack.c.l.b16 %v714
        %v988 = vunpack.c.l.b16 %v715
        %v989 = vunpack.c.l.b16 %v716
        %v990 = vunpack.c.l.b16 %v717
        %v991 = vunpack.c.l.b16 %v718
        %v992 = vunpack.c.l.b16 %v719
        %v993 = vunpack.c.l.b16 %v720
        %v994 = vunpack.c.l.b16 %v721
        %v995 = vunpack.c.l.b16 %v722
        %v996 = vunpack.c.l.b16 %v723
        %v997 = vunpack.c.l.b16 %v724
        %v998 = vunpack.c.l.b16 %v725
        %v999 = vunpack.c.l.b16 %v726
        %v1000 = vunpack.c.l.b16 %v727
        %v1001 = vunpack.c.l.b16 %v728
        %v1002 = vunpack.c.l.b16 %v729
        %v1003 = vunpack.c.l.b16 %v730
        %v1004 = vunpack.c.l.b16 %v731
        %v1005 = vunpack.c.l.b16 %v732
        %v1006 = vunpack.c.l.b16 %v733
        %v1007 = vunpack.c.l.b16 %v734
        %v1008 = vunpack.c.l.b16 %v735
        %v1009 = vunpack.c.l.b16 %v736
        %v1010 = vunpack.c.l.b16 %v737
        %v1011 = vunpack.c.l.b16 %v738
        %v1012 = vunpack.c.l.b16 %v739
        %v1013 = vunpack.c.l.b16 %v740
        %v1014 = vunpack.c.l.b16 %v741
        %v1015 = vunpack.c.l.b16 %v742
        %v1016 = vunpack.c.l.b16 %v743
        %v1017 = vunpack.c.l.b16 %v744
        %v1018 = vunpack.c.l.b16 %v745
        %v1019 = vunpack.c.l.b16 %v746
        %v1020 = vunpack.c.l.b16 %v747
        %v1021 = vunpack.c.l.b16 %v748
        %v1022 = vunpack.c.l.b16 %v749
        %v1023 = vunpack.c.l.b16 %v750
        %v1024 = vunpack.c.l.b16 %v751
        %v1025 = vunpack.c.l.b16 %v752
        %v1026 = vunpack.c.l.b16 %v753
        %v1027 = vunpack.c.l.b16 %v754
        %v1028 = vunpack.c.l.b16 %v755
        %v1029 = vunpack.c.l.b16 %v756
        %v1030 = vunpack.c.l.b16 %v757
        %v1031 = vpack.c.b16 %v934, %v933
        %v1032 = vpack.c.b16 %v936, %v935
        %v1033 = vpack.c.b16 %v938, %v937
        %v1034 = vpack.c.b16 %v940, %v939
        %v1035 = vpack.c.b16 %v942, %v941
        %v1036 = vpack.c.b16 %v944, %v943
        %v1037 = vpack.c.b16 %v946, %v945
        %v1038 = vpack.c.b16 %v948, %v947
        %v1039 = vpack.c.b16 %v950, %v949
        %v1040 = vpack.c.b16 %v952, %v951
        %v1041 = vpack.c.b16 %v954, %v953
        %v1042 = vpack.c.b16 %v956, %v955
        %v1043 = vpack.c.b16 %v958, %v957
        %v1044 = vpack.c.b16 %v960, %v959
        %v1045 = vpack.c.b16 %v962, %v961
        %v1046 = vpack.c.b16 %v964, %v963
        %v1047 = vpack.c.b16 %v966, %v965
        %v1048 = vpack.c.b16 %v968, %v967
        %v1049 = vpack.c.b16 %v970, %v969
        %v1050 = vpack.c.b16 %v972, %v971
        %v1051 = vpack.c.b16 %v974, %v973
        %v1052 = vpack.c.b16 %v976, %v975
        %v1053 = vpack.c.b16 %v978, %v977
        %v1054 = vpack.c.b16 %v980, %v979
        %v1055 = vpack.c.b16 %v982, %v981
        %v1056 = vpack.c.b16 %v984, %v983
        %v1057 = vpack.c.b16 %v986, %v985
        %v1058 = vpack.c.b16 %v988, %v987
        %v1059 = vpack.c.b16 %v990, %v989
        %v1060 = vpack.c.b16 %v992, %v991
        %v1061 = vpack.c.b16 %v994, %v993
        %v1062 = vpack.c.b16 %v996, %v995
        %v1063 = vpack.c.b16 %v998, %v997
        %v1064 = vpack.c.b16 %v1000, %v999
        %v1065 = vpack.c.b16 %v1002, %v1001
        %v1066 = vpack.c.b16 %v1004, %v1003
        %v1067 = vpack.c.b16 %v1006, %v1005
        %v1068 = vpack.c.b16 %v1008, %v1007
        %v1069 = vpack.c.b16 %v1010, %v1009
        %v1070 = vpack.c.b16 %v1012, %v1011
        %v1071 = vpack.c.b16 %v1014, %v1013
        %v1072 = vpack.c.b16 %v1016, %v1015
        %v1073 = vpack.c.b16 %v1018, %v1017
        %v1074 = vpack.c.b16 %v1020, %v1019
        %v1075 = vpack.c.b16 %v1022, %v1021
        %v1076 = vpack.c.b16 %v1024, %v1023
        %v1077 = vpack.c.b16 %v1026, %v1025
        %v1078 = vpack.c.b16 %v1028, %v1027
        %v1079 = vpack.c.b16 %v1030, %v1029
        %vm1129 = vcmask 130048
        %v1131 = vsel %vm1129, %v815, 0
        %v1134 = vsel %vm1129, %v822, 0
        %1136 = vmatprep.subr.bf16.mxu0 0
        %1137 = vmatpush1.bf16.msra.mxu0 %v1038
        %1138 = vmatprep.subr.bf16.mxu0 0
        %1139 = vmatpush1.bf16.msra.mxu0 %v1037
        %1140 = vmatprep.subr.bf16.mxu0 0
        %1141 = vmatpush1.bf16.msra.mxu0 %v1036
        %1142 = vmatprep.subr.bf16.mxu0 0
        %1143 = vmatpush1.bf16.msra.mxu0 %v1035
        %1144 = vmatprep.subr.bf16.mxu0 0
        %1145 = vmatpush1.bf16.msra.mxu0 %v1034
        %1146 = vmatprep.subr.bf16.mxu0 0
        %1147 = vmatpush1.bf16.msra.mxu0 %v1033
        %1148 = vmatprep.subr.bf16.mxu0 0
        %1149 = vmatpush1.bf16.msra.mxu0 %v1032
        %1150 = vmatprep.subr.bf16.mxu0 0
        %1151 = vmatpush1.bf16.msra.mxu0 %v1031
        %1152 = vmatprep.subr.bf16.mxu0 0
        %1153 = vmatpush2.bf16.msra.mxu0 %v1046
        %1154 = vmatprep.subr.bf16.mxu0 0
        %1155 = vmatpush2.bf16.msra.mxu0 %v1045
        %1156 = vmatprep.subr.bf16.mxu0 0
        %1157 = vmatpush2.bf16.msra.mxu0 %v1044
        %1158 = vmatprep.subr.bf16.mxu0 0
        %1159 = vmatpush2.bf16.msra.mxu0 %v1043
        %1160 = vmatprep.subr.bf16.mxu0 0
        %1161 = vmatpush2.bf16.msra.mxu0 %v1042
        %1162 = vmatprep.subr.bf16.mxu0 0
        %1163 = vmatpush2.bf16.msra.mxu0 %v1041
        %1164 = vmatprep.subr.bf16.mxu0 0
        %1165 = vmatpush2.bf16.msra.mxu0 %v1040
        %1166 = vmatprep.subr.bf16.mxu0 0
        %1167 = vmatpush2.bf16.msra.mxu0 %v1039
        %1168 = vmatprep.mubr.bf16.mxu0 %v810
        %1169 = vmatmul.mubr.bf16.gmra.mxu0 %v809
        %v1170 = vpop.f32.mrf.mxu0
        %v1171 = vadd.f32 %v763, %v1170
        %v1172 = vpop.f32.mrf.mxu0
        %v1173 = vpop.f32.mrf.mxu0
        %v1174 = vadd.f32 %v763, %v1173
        %v1175 = vpop.f32.mrf.mxu0
        %1176 = vmatprep.mubr.bf16.mxu0 %v817
        %1177 = vmatmul.mubr.bf16.gmra.mxu0 %v816
        %v1178 = vpop.f32.mrf.mxu0
        %v1179 = vadd.f32 %v763, %v1178
        %v1180 = vpop.f32.mrf.mxu0
        %v1181 = vpop.f32.mrf.mxu0
        %v1182 = vadd.f32 %v763, %v1181
        %v1183 = vpop.f32.mrf.mxu0
        %1184 = vdwg.mxu0
        %1185 = vmatprep.subr.bf16.mxu0 0
        %1186 = vmatpush1.bf16.msra.mxu0 %v1054
        %1187 = vmatprep.subr.bf16.mxu0 0
        %1188 = vmatpush1.bf16.msra.mxu0 %v1053
        %1189 = vmatprep.subr.bf16.mxu0 0
        %1190 = vmatpush1.bf16.msra.mxu0 %v1052
        %1191 = vmatprep.subr.bf16.mxu0 0
        %1192 = vmatpush1.bf16.msra.mxu0 %v1051
        %1193 = vmatprep.subr.bf16.mxu0 0
        %1194 = vmatpush1.bf16.msra.mxu0 %v1050
        %1195 = vmatprep.subr.bf16.mxu0 0
        %1196 = vmatpush1.bf16.msra.mxu0 %v1049
        %1197 = vmatprep.subr.bf16.mxu0 0
        %1198 = vmatpush1.bf16.msra.mxu0 %v1048
        %1199 = vmatprep.subr.bf16.mxu0 0
        %1200 = vmatpush1.bf16.msra.mxu0 %v1047
        %1201 = vmatprep.subr.bf16.mxu0 0
        %1202 = vmatpush2.bf16.msra.mxu0 %v1062
        %1203 = vmatprep.subr.bf16.mxu0 0
        %1204 = vmatpush2.bf16.msra.mxu0 %v1061
        %1205 = vmatprep.subr.bf16.mxu0 0
        %1206 = vmatpush2.bf16.msra.mxu0 %v1060
        %1207 = vmatprep.subr.bf16.mxu0 0
        %1208 = vmatpush2.bf16.msra.mxu0 %v1059
        %1209 = vmatprep.subr.bf16.mxu0 0
        %1210 = vmatpush2.bf16.msra.mxu0 %v1058
        %1211 = vmatprep.subr.bf16.mxu0 0
        %1212 = vmatpush2.bf16.msra.mxu0 %v1057
        %1213 = vmatprep.subr.bf16.mxu0 0
        %1214 = vmatpush2.bf16.msra.mxu0 %v1056
        %1215 = vmatprep.subr.bf16.mxu0 0
        %1216 = vmatpush2.bf16.msra.mxu0 %v1055
        %1217 = vmatprep.mubr.bf16.mxu0 %v812
        %1218 = vmatmul.mubr.bf16.gmra.mxu0 %v811
        %v1219 = vpop.f32.mrf.mxu0
        %v1220 = vadd.f32 %v1171, %v1219
        %v1221 = vpop.f32.mrf.mxu0
        %v1222 = vpop.f32.mrf.mxu0
        %v1223 = vadd.f32 %v1174, %v1222
        %v1224 = vpop.f32.mrf.mxu0
        %1225 = vmatprep.mubr.bf16.mxu0 %v819
        %1226 = vmatmul.mubr.bf16.gmra.mxu0 %v818
        %v1227 = vpop.f32.mrf.mxu0
        %v1228 = vadd.f32 %v1179, %v1227
        %v1229 = vpop.f32.mrf.mxu0
        %v1230 = vpop.f32.mrf.mxu0
        %v1231 = vadd.f32 %v1182, %v1230
        %v1232 = vpop.f32.mrf.mxu0
        %1233 = vdwg.mxu0
        %1234 = vmatprep.subr.bf16.mxu0 0
        %1235 = vmatpush1.bf16.msra.mxu0 %v1070
        %1236 = vmatprep.subr.bf16.mxu0 0
        %1237 = vmatpush1.bf16.msra.mxu0 %v1069
        %1238 = vmatprep.subr.bf16.mxu0 0
        %1239 = vmatpush1.bf16.msra.mxu0 %v1068
        %1240 = vmatprep.subr.bf16.mxu0 0
        %1241 = vmatpush1.bf16.msra.mxu0 %v1067
        %1242 = vmatprep.subr.bf16.mxu0 0
        %1243 = vmatpush1.bf16.msra.mxu0 %v1066
        %1244 = vmatprep.subr.bf16.mxu0 0
        %1245 = vmatpush1.bf16.msra.mxu0 %v1065
        %1246 = vmatprep.subr.bf16.mxu0 0
        %1247 = vmatpush1.bf16.msra.mxu0 %v1064
        %1248 = vmatprep.subr.bf16.mxu0 0
        %1249 = vmatpush1.bf16.msra.mxu0 %v1063
        %1250 = vmatprep.subr.bf16.mxu0 0
        %1251 = vmatpush2.bf16.msra.mxu0 %v1078
        %1252 = vmatprep.subr.bf16.mxu0 0
        %1253 = vmatpush2.bf16.msra.mxu0 %v1077
        %1254 = vmatprep.subr.bf16.mxu0 0
        %1255 = vmatpush2.bf16.msra.mxu0 %v1076
        %1256 = vmatprep.subr.bf16.mxu0 0
        %1257 = vmatpush2.bf16.msra.mxu0 %v1075
        %1258 = vmatprep.subr.bf16.mxu0 0
        %1259 = vmatpush2.bf16.msra.mxu0 %v1074
        %1260 = vmatprep.subr.bf16.mxu0 0
        %1261 = vmatpush2.bf16.msra.mxu0 %v1073
        %1262 = vmatprep.subr.bf16.mxu0 0
        %1263 = vmatpush2.bf16.msra.mxu0 %v1072
        %1264 = vmatprep.subr.bf16.mxu0 0
        %1265 = vmatpush2.bf16.msra.mxu0 %v1071
        %1266 = vmatprep.mubr.bf16.mxu0 %v814
        %1267 = vmatmul.mubr.bf16.gmra.mxu0 %v813
        %v1268 = vpop.f32.mrf.mxu0
        %v1269 = vadd.f32 %v1220, %v1268
        %v1270 = vpop.f32.mrf.mxu0
        %v1271 = vpop.f32.mrf.mxu0
        %v1272 = vadd.f32 %v1223, %v1271
        %v1273 = vpop.f32.mrf.mxu0
        %1274 = vmatprep.mubr.bf16.mxu0 %v821
        %1275 = vmatmul.mubr.bf16.gmra.mxu0 %v820
        %v1276 = vpop.f32.mrf.mxu0
        %v1277 = vadd.f32 %v1228, %v1276
        %v1278 = vpop.f32.mrf.mxu0
        %v1279 = vpop.f32.mrf.mxu0
        %v1280 = vadd.f32 %v1231, %v1279
        %v1281 = vpop.f32.mrf.mxu0
        %1282 = vdwg.mxu0
        %1283 = vmatprep.subr.bf16.mxu0 0
        %1284 = vmatpush1.bf16.msra.mxu0 0
        %1285 = vmatprep.subr.bf16.mxu0 0
        %1286 = vmatpush1.bf16.msra.mxu0 0
        %1287 = vmatprep.subr.bf16.mxu0 0
        %1288 = vmatpush1.bf16.msra.mxu0 0
        %1289 = vmatprep.subr.bf16.mxu0 0
        %1290 = vmatpush1.bf16.msra.mxu0 0
        %1291 = vmatprep.subr.bf16.mxu0 0
        %1292 = vmatpush1.bf16.msra.mxu0 0
        %1293 = vmatprep.subr.bf16.mxu0 0
        %1294 = vmatpush1.bf16.msra.mxu0 0
        %1295 = vmatprep.subr.bf16.mxu0 0
        %1296 = vmatpush1.bf16.msra.mxu0 0
        %1297 = vmatprep.subr.bf16.mxu0 0
        %1298 = vmatpush1.bf16.msra.mxu0 %v1079
        %1299 = vmatprep.subr.bf16.mxu0 0
        %1300 = vmatpush2.bf16.msra.mxu0 0
        %1301 = vmatprep.subr.bf16.mxu0 0
        %1302 = vmatpush2.bf16.msra.mxu0 0
        %1303 = vmatprep.subr.bf16.mxu0 0
        %1304 = vmatpush2.bf16.msra.mxu0 0
        %1305 = vmatprep.subr.bf16.mxu0 0
        %1306 = vmatpush2.bf16.msra.mxu0 0
        %1307 = vmatprep.subr.bf16.mxu0 0
        %1308 = vmatpush2.bf16.msra.mxu0 0
        %1309 = vmatprep.subr.bf16.mxu0 0
        %1310 = vmatpush2.bf16.msra.mxu0 0
        %1311 = vmatprep.subr.bf16.mxu0 0
        %1312 = vmatpush2.bf16.msra.mxu0 0
        %1313 = vmatprep.subr.bf16.mxu0 0
        %1314 = vmatpush2.bf16.msra.mxu0 0
        %1315 = vmatprep.mubr.bf16.mxu0 0
        %1316 = vmatmul.mubr.bf16.gmra.mxu0 %v1131
        %v1317 = vpop.f32.mrf.mxu0
        %v1318 = vadd.f32 %v1269, %v1317
        %v1319 = vpop.f32.mrf.mxu0
        %v1320 = vpop.f32.mrf.mxu0
        %v1321 = vadd.f32 %v1272, %v1320
        %v1322 = vpop.f32.mrf.mxu0
        %1323 = vmatprep.mubr.bf16.mxu0 0
        %1324 = vmatmul.mubr.bf16.gmra.mxu0 %v1134
        %v1325 = vpop.f32.mrf.mxu0
        %v1326 = vadd.f32 %v1277, %v1325
        %v1327 = vpop.f32.mrf.mxu0
        %v1328 = vpop.f32.mrf.mxu0
        %v1329 = vadd.f32 %v1280, %v1328
        %v1330 = vpop.f32.mrf.mxu0
        %1331 = vdwg.mxu0
        %v1332 = vmax.f32 %v1318, 0.0
        %v1333 = vmax.f32 %v1321, 0.0
        %v1334 = vmax.f32 %v1326, 0.0
        %v1335 = vmax.f32 %v1329, 0.0
        %v1336 = vpack.c.bf16 %v1333, %v1332
        %v1337 = vpack.c.bf16 %v1335, %v1334
        %v1338 = vld [vmem:[%s4] sm:$0xf]
        %v1339 = vld [vmem:[%s4 + $0x4] sm:$0xf]
        %v1340 = vld [vmem:[%s4 + $0x8] sm:$0xf]
        %v1341 = vld [vmem:[%s4 + $0xc] sm:$0xf]
        %v1342 = vld [vmem:[%s4 + $0x10] sm:$0xf]
        %v1343 = vld [vmem:[%s4 + $0x14] sm:$0xf]
        %v1344 = vld [vmem:[%s4 + $0x18] sm:$0xf]
        %v1345 = vld [vmem:[%s4 + $0x1c] sm:$0xf]
        %v1346 = vld [vmem:[%s4 + $0x20] sm:$0xf]
        %v1347 = vld [vmem:[%s4 + $0x24] sm:$0xf]
        %v1348 = vld [vmem:[%s4 + $0x28] sm:$0xf]
        %v1349 = vld [vmem:[%s4 + $0x2c] sm:$0xf]
        %v1350 = vld [vmem:[%s4 + $0x30] sm:$0xf]
        %v1351 = vld [vmem:[%s4 + $0x34] sm:$0xf]
        %v1352 = vld [vmem:[%s4 + $0x38] sm:$0xf]
        %v1353 = vld [vmem:[%s4 + $0x3c] sm:$0xf]
        %v1354 = vld [vmem:[%s5] sm:$0x1]
        %v1356 = vlaneseq
        %v1357 = vshrl.u32 %v1356, 7
        %v1358 = vsub.s32 0, %v1357
        %v1359 = vrot.slane %v1354, %v1358
        %v1377 = vunpack.c.l.b16 %v1338
        %v1378 = vunpack.c.l.b16 %v1339
        %v1379 = vunpack.c.l.b16 %v1340
        %v1380 = vunpack.c.l.b16 %v1341
        %v1381 = vunpack.c.l.b16 %v1342
        %v1382 = vunpack.c.l.b16 %v1343
        %v1383 = vunpack.c.l.b16 %v1344
        %v1384 = vunpack.c.l.b16 %v1345
        %v1385 = vunpack.c.l.b16 %v1346
        %v1386 = vunpack.c.l.b16 %v1347
        %v1387 = vunpack.c.l.b16 %v1348
        %v1388 = vunpack.c.l.b16 %v1349
        %v1389 = vunpack.c.l.b16 %v1350
        %v1390 = vunpack.c.l.b16 %v1351
        %v1391 = vunpack.c.l.b16 %v1352
        %v1392 = vunpack.c.l.b16 %v1353
        %v1393 = vpack.c.b16 %v1378, %v1377
        %v1394 = vpack.c.b16 %v1380, %v1379
        %v1395 = vpack.c.b16 %v1382, %v1381
        %v1396 = vpack.c.b16 %v1384, %v1383
        %v1397 = vpack.c.b16 %v1386, %v1385
        %v1398 = vpack.c.b16 %v1388, %v1387
        %v1399 = vpack.c.b16 %v1390, %v1389
        %v1400 = vpack.c.b16 %v1392, %v1391
        %1409 = vmatprep.subr.bf16.mxu0 0
        %1410 = vmatpush1.bf16.msra.mxu0 %v1400
        %1411 = vmatprep.subr.bf16.mxu0 0
        %1412 = vmatpush1.bf16.msra.mxu0 %v1399
        %1413 = vmatprep.subr.bf16.mxu0 0
        %1414 = vmatpush1.bf16.msra.mxu0 %v1398
        %1415 = vmatprep.subr.bf16.mxu0 0
        %1416 = vmatpush1.bf16.msra.mxu0 %v1397
        %1417 = vmatprep.subr.bf16.mxu0 0
        %1418 = vmatpush1.bf16.msra.mxu0 %v1396
        %1419 = vmatprep.subr.bf16.mxu0 0
        %1420 = vmatpush1.bf16.msra.mxu0 %v1395
        %1421 = vmatprep.subr.bf16.mxu0 0
        %1422 = vmatpush1.bf16.msra.mxu0 %v1394
        %1423 = vmatprep.subr.bf16.mxu0 0
        %1424 = vmatpush1.bf16.msra.mxu0 %v1393
        %1425 = vmatprep.subr.bf16.mxu0 0
        %1426 = vmatpush2.bf16.msra.mxu0 0
        %1427 = vmatprep.subr.bf16.mxu0 0
        %1428 = vmatpush2.bf16.msra.mxu0 0
        %1429 = vmatprep.subr.bf16.mxu0 0
        %1430 = vmatpush2.bf16.msra.mxu0 0
        %1431 = vmatprep.subr.bf16.mxu0 0
        %1432 = vmatpush2.bf16.msra.mxu0 0
        %1433 = vmatprep.subr.bf16.mxu0 0
        %1434 = vmatpush2.bf16.msra.mxu0 0
        %1435 = vmatprep.subr.bf16.mxu0 0
        %1436 = vmatpush2.bf16.msra.mxu0 0
        %1437 = vmatprep.subr.bf16.mxu0 0
        %1438 = vmatpush2.bf16.msra.mxu0 0
        %1439 = vmatprep.subr.bf16.mxu0 0
        %1440 = vmatpush2.bf16.msra.mxu0 0
        %1441 = vmatprep.mubr.bf16.mxu0 0
        %1442 = vmatmul.mubr.bf16.gmra.mxu0 %v1336
        %v1443 = vpop.f32.mrf.mxu0
        %v1444 = vadd.f32 %v1359, %v1443
        %v1445 = vpop.f32.mrf.mxu0
        %v1446 = vpop.f32.mrf.mxu0
        %v1447 = vadd.f32 %v1359, %v1446
        %v1448 = vpop.f32.mrf.mxu0
        %1449 = vmatprep.mubr.bf16.mxu0 0
        %1450 = vmatmul.mubr.bf16.gmra.mxu0 %v1337
        %v1451 = vpop.f32.mrf.mxu0
        %v1452 = vadd.f32 %v1359, %v1451
        %v1453 = vpop.f32.mrf.mxu0
        %v1454 = vpop.f32.mrf.mxu0
        %v1455 = vadd.f32 %v1359, %v1454
        %v1456 = vpop.f32.mrf.mxu0
        %1457 = vdwg.mxu0
        %v1458 = vmax.f32 %v1444, 0.0
        %v1459 = vmax.f32 %v1447, 0.0
        %v1460 = vmax.f32 %v1452, 0.0
        %v1461 = vmax.f32 %v1455, 0.0
        %v1462 = vpack.c.bf16 %v1459, %v1458
        %v1463 = vpack.c.bf16 %v1461, %v1460
        %v1464 = vld [vmem:[%s6] sm:$0xf]
        %v1465 = vld [vmem:[%s6 + $0x4] sm:$0xf]
        %v1466 = vld [vmem:[%s6 + $0x8] sm:$0xf]
        %v1467 = vld [vmem:[%s6 + $0xc] sm:$0xf]
        %v1468 = vld [vmem:[%s6 + $0x10] sm:$0xf]
        %v1469 = vld [vmem:[%s6 + $0x14] sm:$0xf]
        %v1470 = vld [vmem:[%s6 + $0x18] sm:$0xf]
        %v1471 = vld [vmem:[%s6 + $0x1c] sm:$0xf]
        %v1472 = vld [vmem:[%s7] sm:$0x1]
        %v1474 = vlaneseq
        %v1475 = vshrl.u32 %v1474, 7
        %v1476 = vsub.s32 0, %v1475
        %v1477 = vrot.slane %v1472, %v1476
        %v1487 = vunpack.c.l.b16 %v1464
        %v1488 = vunpack.c.l.b16 %v1465
        %v1489 = vunpack.c.l.b16 %v1466
        %v1490 = vunpack.c.l.b16 %v1467
        %v1491 = vunpack.c.l.b16 %v1468
        %v1492 = vunpack.c.l.b16 %v1469
        %v1493 = vunpack.c.l.b16 %v1470
        %v1494 = vunpack.c.l.b16 %v1471
        %v1495 = vpack.c.b16 %v1488, %v1487
        %v1496 = vpack.c.b16 %v1490, %v1489
        %v1497 = vpack.c.b16 %v1492, %v1491
        %v1498 = vpack.c.b16 %v1494, %v1493
        %vm1503 = vcmask 523264
        %v1505 = vsel %vm1503, %v1462, 0
        %v1508 = vsel %vm1503, %v1463, 0
        %1510 = vmatprep.subr.bf16.mxu0 0
        %1511 = vmatpush1.bf16.msra.mxu0 0
        %1512 = vmatprep.subr.bf16.mxu0 0
        %1513 = vmatpush1.bf16.msra.mxu0 0
        %1514 = vmatprep.subr.bf16.mxu0 0
        %1515 = vmatpush1.bf16.msra.mxu0 0
        %1516 = vmatprep.subr.bf16.mxu0 0
        %1517 = vmatpush1.bf16.msra.mxu0 0
        %1518 = vmatprep.subr.bf16.mxu0 0
        %1519 = vmatpush1.bf16.msra.mxu0 %v1498
        %1520 = vmatprep.subr.bf16.mxu0 0
        %1521 = vmatpush1.bf16.msra.mxu0 %v1497
        %1522 = vmatprep.subr.bf16.mxu0 0
        %1523 = vmatpush1.bf16.msra.mxu0 %v1496
        %1524 = vmatprep.subr.bf16.mxu0 0
        %1525 = vmatpush1.bf16.msra.mxu0 %v1495
        %1526 = vmatprep.subr.bf16.mxu0 0
        %1527 = vmatpush2.bf16.msra.mxu0 0
        %1528 = vmatprep.subr.bf16.mxu0 0
        %1529 = vmatpush2.bf16.msra.mxu0 0
        %1530 = vmatprep.subr.bf16.mxu0 0
        %1531 = vmatpush2.bf16.msra.mxu0 0
        %1532 = vmatprep.subr.bf16.mxu0 0
        %1533 = vmatpush2.bf16.msra.mxu0 0
        %1534 = vmatprep.subr.bf16.mxu0 0
        %1535 = vmatpush2.bf16.msra.mxu0 0
        %1536 = vmatprep.subr.bf16.mxu0 0
        %1537 = vmatpush2.bf16.msra.mxu0 0
        %1538 = vmatprep.subr.bf16.mxu0 0
        %1539 = vmatpush2.bf16.msra.mxu0 0
        %1540 = vmatprep.subr.bf16.mxu0 0
        %1541 = vmatpush2.bf16.msra.mxu0 0
        %1542 = vmatprep.mubr.bf16.mxu0 0
        %1543 = vmatmul.mubr.bf16.gmra.mxu0 %v1505
        %v1544 = vpop.f32.mrf.mxu0
        %v1545 = vadd.f32 %v1477, %v1544
        %v1546 = vpop.f32.mrf.mxu0
        %v1547 = vpop.f32.mrf.mxu0
        %v1548 = vadd.f32 %v1477, %v1547
        %v1549 = vpop.f32.mrf.mxu0
        %1550 = vmatprep.mubr.bf16.mxu0 0
        %1551 = vmatmul.mubr.bf16.gmra.mxu0 %v1508
        %v1552 = vpop.f32.mrf.mxu0
        %v1553 = vadd.f32 %v1477, %v1552
        %v1554 = vpop.f32.mrf.mxu0
        %v1555 = vpop.f32.mrf.mxu0
        %v1556 = vadd.f32 %v1477, %v1555
        %v1557 = vpop.f32.mrf.mxu0
        %1558 = vdwg.mxu0
        %v1559 = vmax.f32 %v1545, 0.0
        %v1560 = vmax.f32 %v1548, 0.0
        %v1561 = vmax.f32 %v1553, 0.0
        %v1562 = vmax.f32 %v1556, 0.0
        %v1563 = vpack.c.bf16 %v1560, %v1559
        %v1564 = vpack.c.bf16 %v1562, %v1561
        %v1565 = vld [vmem:[%s8] sm:$0xf]
        %v1566 = vld [vmem:[%s8 + $0x4] sm:$0xf]
        %v1567 = vld [vmem:[%s8 + $0x8] sm:$0xf]
        %v1568 = vld [vmem:[%s8 + $0xc] sm:$0xf]
        %v1569 = vld [vmem:[%s9] sm:$0x1]
        %v1571 = vlaneseq
        %v1572 = vshrl.u32 %v1571, 7
        %v1573 = vsub.s32 0, %v1572
        %v1574 = vrot.slane %v1569, %v1573
        %v1580 = vunpack.c.l.b16 %v1565
        %v1581 = vunpack.c.l.b16 %v1566
        %v1582 = vunpack.c.l.b16 %v1567
        %v1583 = vunpack.c.l.b16 %v1568
        %v1584 = vpack.c.b16 %v1581, %v1580
        %v1585 = vpack.c.b16 %v1583, %v1582
        %vm1588 = vcmask 261120
        %v1590 = vsel %vm1588, %v1563, 0
        %v1593 = vsel %vm1588, %v1564, 0
        %1595 = vmatprep.subr.bf16.mxu0 0
        %1596 = vmatpush1.bf16.msra.mxu0 0
        %1597 = vmatprep.subr.bf16.mxu0 0
        %1598 = vmatpush1.bf16.msra.mxu0 0
        %1599 = vmatprep.subr.bf16.mxu0 0
        %1600 = vmatpush1.bf16.msra.mxu0 0
        %1601 = vmatprep.subr.bf16.mxu0 0
        %1602 = vmatpush1.bf16.msra.mxu0 0
        %1603 = vmatprep.subr.bf16.mxu0 0
        %1604 = vmatpush1.bf16.msra.mxu0 0
        %1605 = vmatprep.subr.bf16.mxu0 0
        %1606 = vmatpush1.bf16.msra.mxu0 0
        %1607 = vmatprep.subr.bf16.mxu0 0
        %1608 = vmatpush1.bf16.msra.mxu0 %v1585
        %1609 = vmatprep.subr.bf16.mxu0 0
        %1610 = vmatpush1.bf16.msra.mxu0 %v1584
        %1611 = vmatprep.subr.bf16.mxu0 0
        %1612 = vmatpush2.bf16.msra.mxu0 0
        %1613 = vmatprep.subr.bf16.mxu0 0
        %1614 = vmatpush2.bf16.msra.mxu0 0
        %1615 = vmatprep.subr.bf16.mxu0 0
        %1616 = vmatpush2.bf16.msra.mxu0 0
        %1617 = vmatprep.subr.bf16.mxu0 0
        %1618 = vmatpush2.bf16.msra.mxu0 0
        %1619 = vmatprep.subr.bf16.mxu0 0
        %1620 = vmatpush2.bf16.msra.mxu0 0
        %1621 = vmatprep.subr.bf16.mxu0 0
        %1622 = vmatpush2.bf16.msra.mxu0 0
        %1623 = vmatprep.subr.bf16.mxu0 0
        %1624 = vmatpush2.bf16.msra.mxu0 0
        %1625 = vmatprep.subr.bf16.mxu0 0
        %1626 = vmatpush2.bf16.msra.mxu0 0
        %1627 = vmatprep.mubr.bf16.mxu0 0
        %1628 = vmatmul.mubr.bf16.gmra.mxu0 %v1590
        %v1629 = vpop.f32.mrf.mxu0
        %v1630 = vadd.f32 %v1574, %v1629
        %v1631 = vpop.f32.mrf.mxu0
        %v1632 = vpop.f32.mrf.mxu0
        %v1633 = vadd.f32 %v1574, %v1632
        %v1634 = vpop.f32.mrf.mxu0
        %1635 = vmatprep.mubr.bf16.mxu0 0
        %1636 = vmatmul.mubr.bf16.gmra.mxu0 %v1593
        %v1637 = vpop.f32.mrf.mxu0
        %v1638 = vadd.f32 %v1574, %v1637
        %v1639 = vpop.f32.mrf.mxu0
        %v1640 = vpop.f32.mrf.mxu0
        %v1641 = vadd.f32 %v1574, %v1640
        %v1642 = vpop.f32.mrf.mxu0
        %1643 = vdwg.mxu0
        %v1644 = vmul.f32 %v1630, 1.442695
        %v1645 = vpow.pop %v1644
        %v1646 = vmul.f32 %v1633, 1.442695
        %v1647 = vpow.pop %v1646
        %v1648 = vmul.f32 %v1638, 1.442695
        %v1649 = vpow.pop %v1648
        %v1650 = vmul.f32 %v1641, 1.442695
        %v1651 = vpow.pop %v1650
        %v1652 = vmul.f32 %v1630, %v1630
        %v1653 = vmul.f32 %v1633, %v1633
        %v1654 = vmul.f32 %v1638, %v1638
        %v1655 = vmul.f32 %v1641, %v1641
        %1660 = vrot.lane.b32.xlu0 %v1645, 120
        %v1661 = vpop.permute.xlu0 %1660
        %1662 = vrot.lane.b32.xlu0 %v1647, 120
        %v1663 = vpop.permute.xlu0 %1662
        %1664 = vrot.lane.b32.xlu0 %v1649, 120
        %v1665 = vpop.permute.xlu0 %1664
        %1666 = vrot.lane.b32.xlu0 %v1651, 120
        %v1667 = vpop.permute.xlu0 %1666
        %v1672 = vadd.f32 %v1652, %v1661
        %v1673 = vadd.f32 %v1653, %v1663
        %v1674 = vadd.f32 %v1654, %v1665
        %v1675 = vadd.f32 %v1655, %v1667
        %v1676 = vsub.f32 %v1672, 1.0
        %v1677 = vsub.f32 %v1673, 1.0
        %v1678 = vsub.f32 %v1674, 1.0
        %v1679 = vsub.f32 %v1675, 1.0
        %1684 = vrot.lane.b32.xlu0 %v1630, 120
        %v1685 = vpop.permute.xlu0 %1684
        %1686 = vrot.lane.b32.xlu0 %v1633, 120
        %v1687 = vpop.permute.xlu0 %1686
        %1688 = vrot.lane.b32.xlu0 %v1638, 120
        %v1689 = vpop.permute.xlu0 %1688
        %1690 = vrot.lane.b32.xlu0 %v1641, 120
        %v1691 = vpop.permute.xlu0 %1690
        %v1696 = vsub.f32 %v1676, %v1685
        %v1697 = vsub.f32 %v1677, %v1687
        %v1698 = vsub.f32 %v1678, %v1689
        %v1699 = vsub.f32 %v1679, %v1691
        %v1700 = vmul.f32 %v1696, 0.5
        %v1701 = vmul.f32 %v1697, 0.5
        %v1702 = vmul.f32 %v1698, 0.5
        %v1703 = vmul.f32 %v1699, 0.5
        %vm1704 = vcmask 64512
        %v1705 = vsel %vm1704, %v1700, 0.0
        %1706 = vadd.xlane.f32.xlu0 %v1705
        %v1707 = vpop.xlane.xlu0 %1706
        %v1708 = vsel %vm1704, %v1701, 0.0
        %1709 = vadd.xlane.f32.xlu0 %v1708
        %v1710 = vpop.xlane.xlu0 %1709
        %v1711 = vsel %vm1704, %v1702, 0.0
        %1712 = vadd.xlane.f32.xlu0 %v1711
        %v1713 = vpop.xlane.xlu0 %1712
        %v1714 = vsel %vm1704, %v1703, 0.0
        %1715 = vadd.xlane.f32.xlu0 %v1714
        %v1716 = vpop.xlane.xlu0 %1715
        %vm1717 = vcmask 7168
        %1718 = vst.msk [vmem:[%s641] sm:$0xff] %vm1717, %v1707
        %1719 = vst.msk [vmem:[%s641 + $0x8] sm:$0xff] %vm1717, %v1710
        %1720 = vst.msk [vmem:[%s641 + $0x10] sm:$0xff] %vm1717, %v1713
        %1721 = vst.msk [vmem:[%s641 + $0x18] sm:$0xff] %vm1717, %v1716
        %v1722 = vmul.f32 %v1630, 0.5
        %v1723 = vmul.f32 %v1633, 0.5
        %v1724 = vmul.f32 %v1638, 0.5
        %v1725 = vmul.f32 %v1641, 0.5
        %v1726 = vmul.f32 %v1722, 1.442695
        %v1727 = vpow.pop %v1726
        %v1728 = vmul.f32 %v1723, 1.442695
        %v1729 = vpow.pop %v1728
        %v1730 = vmul.f32 %v1724, 1.442695
        %v1731 = vpow.pop %v1730
        %v1732 = vmul.f32 %v1725, 1.442695
        %v1733 = vpow.pop %v1732
        %v1734 = vld [vmem:[%s634] sm:$0xff]
        %v1735 = vld [vmem:[%s634 + $0x8] sm:$0xff]
        %v1736 = vld [vmem:[%s634 + $0x10] sm:$0xff]
        %v1737 = vld [vmem:[%s634 + $0x18] sm:$0xff]
        %1742 = vrot.lane.b32.xlu0 %v1734, 8
        %v1743 = vpop.permute.xlu0 %1742
        %1744 = vrot.lane.b32.xlu0 %v1735, 8
        %v1745 = vpop.permute.xlu0 %1744
        %1746 = vrot.lane.b32.xlu0 %v1736, 8
        %v1747 = vpop.permute.xlu0 %1746
        %1748 = vrot.lane.b32.xlu0 %v1737, 8
        %v1749 = vpop.permute.xlu0 %1748
        %v1754 = vmul.f32 %v1727, %v1743
        %v1755 = vmul.f32 %v1729, %v1745
        %v1756 = vmul.f32 %v1731, %v1747
        %v1757 = vmul.f32 %v1733, %v1749
        %1762 = vrot.lane.b32.xlu0 %v1754, 120
        %v1763 = vpop.permute.xlu0 %1762
        %1764 = vrot.lane.b32.xlu0 %v1755, 120
        %v1765 = vpop.permute.xlu0 %1764
        %1766 = vrot.lane.b32.xlu0 %v1756, 120
        %v1767 = vpop.permute.xlu0 %1766
        %1768 = vrot.lane.b32.xlu0 %v1757, 120
        %v1769 = vpop.permute.xlu0 %1768
        %v1774 = vadd.f32 %v1630, %v1763
        %v1775 = vadd.f32 %v1633, %v1765
        %v1776 = vadd.f32 %v1638, %v1767
        %v1777 = vadd.f32 %v1641, %v1769
        %v1778 = vpack.c.bf16 %v1775, %v1774
        %v1779 = vpack.c.bf16 %v1777, %v1776
        %v1780 = vld [vmem:[%s10] sm:$0xf]
        %v1781 = vld [vmem:[%s11] sm:$0x1]
        %v1783 = vlaneseq
        %v1784 = vshrl.u32 %v1783, 7
        %v1785 = vsub.s32 0, %v1784
        %v1786 = vrot.slane %v1781, %v1785
        %v1789 = vsel %vm1704, %v1778, 0
        %v1792 = vsel %vm1704, %v1779, 0
        %vm1794 = vcmask 1043456
        %v1796 = vsel %vm1794, %v1780, 0
        %1798 = vmatprep.subr.bf16.mxu0 0
        %1799 = vmatpush1.bf16.msra.mxu0 0
        %1800 = vmatprep.subr.bf16.mxu0 0
        %1801 = vmatpush1.bf16.msra.mxu0 0
        %1802 = vmatprep.subr.bf16.mxu0 0
        %1803 = vmatpush1.bf16.msra.mxu0 0
        %1804 = vmatprep.subr.bf16.mxu0 0
        %1805 = vmatpush1.bf16.msra.mxu0 0
        %1806 = vmatprep.subr.bf16.mxu0 0
        %1807 = vmatpush1.bf16.msra.mxu0 0
        %1808 = vmatprep.subr.bf16.mxu0 0
        %1809 = vmatpush1.bf16.msra.mxu0 0
        %1810 = vmatprep.subr.bf16.mxu0 0
        %1811 = vmatpush1.bf16.msra.mxu0 0
        %1812 = vmatprep.subr.bf16.mxu0 0
        %1813 = vmatpush1.bf16.msra.mxu0 %v1796
        %1814 = vmatprep.subr.bf16.mxu0 0
        %1815 = vmatpush2.bf16.msra.mxu0 0
        %1816 = vmatprep.subr.bf16.mxu0 0
        %1817 = vmatpush2.bf16.msra.mxu0 0
        %1818 = vmatprep.subr.bf16.mxu0 0
        %1819 = vmatpush2.bf16.msra.mxu0 0
        %1820 = vmatprep.subr.bf16.mxu0 0
        %1821 = vmatpush2.bf16.msra.mxu0 0
        %1822 = vmatprep.subr.bf16.mxu0 0
        %1823 = vmatpush2.bf16.msra.mxu0 0
        %1824 = vmatprep.subr.bf16.mxu0 0
        %1825 = vmatpush2.bf16.msra.mxu0 0
        %1826 = vmatprep.subr.bf16.mxu0 0
        %1827 = vmatpush2.bf16.msra.mxu0 0
        %1828 = vmatprep.subr.bf16.mxu0 0
        %1829 = vmatpush2.bf16.msra.mxu0 0
        %1830 = vmatprep.mubr.bf16.mxu0 0
        %1831 = vmatmul.mubr.bf16.gmra.mxu0 %v1789
        %v1832 = vpop.f32.mrf.mxu0
        %v1833 = vadd.f32 %v1786, %v1832
        %v1834 = vpop.f32.mrf.mxu0
        %v1835 = vpop.f32.mrf.mxu0
        %v1836 = vadd.f32 %v1786, %v1835
        %v1837 = vpop.f32.mrf.mxu0
        %1838 = vmatprep.mubr.bf16.mxu0 0
        %1839 = vmatmul.mubr.bf16.gmra.mxu0 %v1792
        %v1840 = vpop.f32.mrf.mxu0
        %v1841 = vadd.f32 %v1786, %v1840
        %v1842 = vpop.f32.mrf.mxu0
        %v1843 = vpop.f32.mrf.mxu0
        %v1844 = vadd.f32 %v1786, %v1843
        %v1845 = vpop.f32.mrf.mxu0
        %1846 = vdwg.mxu0
        %v1847 = vmax.f32 %v1833, 0.0
        %v1848 = vmax.f32 %v1836, 0.0
        %v1849 = vmax.f32 %v1841, 0.0
        %v1850 = vmax.f32 %v1844, 0.0
        %v1851 = vpack.c.bf16 %v1848, %v1847
        %v1852 = vpack.c.bf16 %v1850, %v1849
        %v1853 = vld [vmem:[%s12] sm:$0xf]
        %v1854 = vld [vmem:[%s12 + $0x4] sm:$0xf]
        %v1855 = vld [vmem:[%s12 + $0x8] sm:$0xf]
        %v1856 = vld [vmem:[%s12 + $0xc] sm:$0xf]
        %v1857 = vld [vmem:[%s13] sm:$0x1]
        %v1859 = vlaneseq
        %v1860 = vshrl.u32 %v1859, 7
        %v1861 = vsub.s32 0, %v1860
        %v1862 = vrot.slane %v1857, %v1861
        %v1868 = vunpack.c.l.b16 %v1853
        %v1869 = vunpack.c.l.b16 %v1854
        %v1870 = vunpack.c.l.b16 %v1855
        %v1871 = vunpack.c.l.b16 %v1856
        %v1872 = vpack.c.b16 %v1869, %v1868
        %v1873 = vpack.c.b16 %v1871, %v1870
        %v1877 = vsel %vm1588, %v1851, 0
        %v1880 = vsel %vm1588, %v1852, 0
        %1882 = vmatprep.subr.bf16.mxu0 0
        %1883 = vmatpush1.bf16.msra.mxu0 0
        %1884 = vmatprep.subr.bf16.mxu0 0
        %1885 = vmatpush1.bf16.msra.mxu0 0
        %1886 = vmatprep.subr.bf16.mxu0 0
        %1887 = vmatpush1.bf16.msra.mxu0 0
        %1888 = vmatprep.subr.bf16.mxu0 0
        %1889 = vmatpush1.bf16.msra.mxu0 0
        %1890 = vmatprep.subr.bf16.mxu0 0
        %1891 = vmatpush1.bf16.msra.mxu0 0
        %1892 = vmatprep.subr.bf16.mxu0 0
        %1893 = vmatpush1.bf16.msra.mxu0 0
        %1894 = vmatprep.subr.bf16.mxu0 0
        %1895 = vmatpush1.bf16.msra.mxu0 %v1873
        %1896 = vmatprep.subr.bf16.mxu0 0
        %1897 = vmatpush1.bf16.msra.mxu0 %v1872
        %1898 = vmatprep.subr.bf16.mxu0 0
        %1899 = vmatpush2.bf16.msra.mxu0 0
        %1900 = vmatprep.subr.bf16.mxu0 0
        %1901 = vmatpush2.bf16.msra.mxu0 0
        %1902 = vmatprep.subr.bf16.mxu0 0
        %1903 = vmatpush2.bf16.msra.mxu0 0
        %1904 = vmatprep.subr.bf16.mxu0 0
        %1905 = vmatpush2.bf16.msra.mxu0 0
        %1906 = vmatprep.subr.bf16.mxu0 0
        %1907 = vmatpush2.bf16.msra.mxu0 0
        %1908 = vmatprep.subr.bf16.mxu0 0
        %1909 = vmatpush2.bf16.msra.mxu0 0
        %1910 = vmatprep.subr.bf16.mxu0 0
        %1911 = vmatpush2.bf16.msra.mxu0 0
        %1912 = vmatprep.subr.bf16.mxu0 0
        %1913 = vmatpush2.bf16.msra.mxu0 0
        %1914 = vmatprep.mubr.bf16.mxu0 0
        %1915 = vmatmul.mubr.bf16.gmra.mxu0 %v1877
        %v1916 = vpop.f32.mrf.mxu0
        %v1917 = vadd.f32 %v1862, %v1916
        %v1918 = vpop.f32.mrf.mxu0
        %v1919 = vpop.f32.mrf.mxu0
        %v1920 = vadd.f32 %v1862, %v1919
        %v1921 = vpop.f32.mrf.mxu0
        %1922 = vmatprep.mubr.bf16.mxu0 0
        %1923 = vmatmul.mubr.bf16.gmra.mxu0 %v1880
        %v1924 = vpop.f32.mrf.mxu0
        %v1925 = vadd.f32 %v1862, %v1924
        %v1926 = vpop.f32.mrf.mxu0
        %v1927 = vpop.f32.mrf.mxu0
        %v1928 = vadd.f32 %v1862, %v1927
        %v1929 = vpop.f32.mrf.mxu0
        %1930 = vdwg.mxu0
        %v1931 = vmax.f32 %v1917, 0.0
        %v1932 = vmax.f32 %v1920, 0.0
        %v1933 = vmax.f32 %v1925, 0.0
        %v1934 = vmax.f32 %v1928, 0.0
        %v1935 = vpack.c.bf16 %v1932, %v1931
        %v1936 = vpack.c.bf16 %v1934, %v1933
        %v1937 = vld [vmem:[%s14] sm:$0xf]
        %v1938 = vld [vmem:[%s14 + $0x4] sm:$0xf]
        %v1939 = vld [vmem:[%s14 + $0x8] sm:$0xf]
        %v1940 = vld [vmem:[%s14 + $0xc] sm:$0xf]
        %v1941 = vld [vmem:[%s14 + $0x10] sm:$0xf]
        %v1942 = vld [vmem:[%s14 + $0x14] sm:$0xf]
        %v1943 = vld [vmem:[%s14 + $0x18] sm:$0xf]
        %v1944 = vld [vmem:[%s14 + $0x1c] sm:$0xf]
        %v1945 = vld [vmem:[%s15] sm:$0x1]
        %v1947 = vlaneseq
        %v1948 = vshrl.u32 %v1947, 7
        %v1949 = vsub.s32 0, %v1948
        %v1950 = vrot.slane %v1945, %v1949
        %v1960 = vunpack.c.l.b16 %v1937
        %v1961 = vunpack.c.l.b16 %v1938
        %v1962 = vunpack.c.l.b16 %v1939
        %v1963 = vunpack.c.l.b16 %v1940
        %v1964 = vunpack.c.l.b16 %v1941
        %v1965 = vunpack.c.l.b16 %v1942
        %v1966 = vunpack.c.l.b16 %v1943
        %v1967 = vunpack.c.l.b16 %v1944
        %v1968 = vpack.c.b16 %v1961, %v1960
        %v1969 = vpack.c.b16 %v1963, %v1962
        %v1970 = vpack.c.b16 %v1965, %v1964
        %v1971 = vpack.c.b16 %v1967, %v1966
        %v1977 = vsel %vm1503, %v1935, 0
        %v1980 = vsel %vm1503, %v1936, 0
        %1982 = vmatprep.subr.bf16.mxu0 0
        %1983 = vmatpush1.bf16.msra.mxu0 0
        %1984 = vmatprep.subr.bf16.mxu0 0
        %1985 = vmatpush1.bf16.msra.mxu0 0
        %1986 = vmatprep.subr.bf16.mxu0 0
        %1987 = vmatpush1.bf16.msra.mxu0 0
        %1988 = vmatprep.subr.bf16.mxu0 0
        %1989 = vmatpush1.bf16.msra.mxu0 0
        %1990 = vmatprep.subr.bf16.mxu0 0
        %1991 = vmatpush1.bf16.msra.mxu0 %v1971
        %1992 = vmatprep.subr.bf16.mxu0 0
        %1993 = vmatpush1.bf16.msra.mxu0 %v1970
        %1994 = vmatprep.subr.bf16.mxu0 0
        %1995 = vmatpush1.bf16.msra.mxu0 %v1969
        %1996 = vmatprep.subr.bf16.mxu0 0
        %1997 = vmatpush1.bf16.msra.mxu0 %v1968
        %1998 = vmatprep.subr.bf16.mxu0 0
        %1999 = vmatpush2.bf16.msra.mxu0 0
        %2000 = vmatprep.subr.bf16.mxu0 0
        %2001 = vmatpush2.bf16.msra.mxu0 0
        %2002 = vmatprep.subr.bf16.mxu0 0
        %2003 = vmatpush2.bf16.msra.mxu0 0
        %2004 = vmatprep.subr.bf16.mxu0 0
        %2005 = vmatpush2.bf16.msra.mxu0 0
        %2006 = vmatprep.subr.bf16.mxu0 0
        %2007 = vmatpush2.bf16.msra.mxu0 0
        %2008 = vmatprep.subr.bf16.mxu0 0
        %2009 = vmatpush2.bf16.msra.mxu0 0
        %2010 = vmatprep.subr.bf16.mxu0 0
        %2011 = vmatpush2.bf16.msra.mxu0 0
        %2012 = vmatprep.subr.bf16.mxu0 0
        %2013 = vmatpush2.bf16.msra.mxu0 0
        %2014 = vmatprep.mubr.bf16.mxu0 0
        %2015 = vmatmul.mubr.bf16.gmra.mxu0 %v1977
        %v2016 = vpop.f32.mrf.mxu0
        %v2017 = vadd.f32 %v1950, %v2016
        %v2018 = vpop.f32.mrf.mxu0
        %v2019 = vpop.f32.mrf.mxu0
        %v2020 = vadd.f32 %v1950, %v2019
        %v2021 = vpop.f32.mrf.mxu0
        %2022 = vmatprep.mubr.bf16.mxu0 0
        %2023 = vmatmul.mubr.bf16.gmra.mxu0 %v1980
        %v2024 = vpop.f32.mrf.mxu0
        %v2025 = vadd.f32 %v1950, %v2024
        %v2026 = vpop.f32.mrf.mxu0
        %v2027 = vpop.f32.mrf.mxu0
        %v2028 = vadd.f32 %v1950, %v2027
        %v2029 = vpop.f32.mrf.mxu0
        %2030 = vdwg.mxu0
        %v2031 = vmax.f32 %v2017, 0.0
        %v2032 = vmax.f32 %v2020, 0.0
        %v2033 = vmax.f32 %v2025, 0.0
        %v2034 = vmax.f32 %v2028, 0.0
        %v2035 = vpack.c.bf16 %v2032, %v2031
        %v2036 = vpack.c.bf16 %v2034, %v2033
        %v2037 = vld [vmem:[%s16] sm:$0xff]
        %v2038 = vld [vmem:[%s16 + $0x8] sm:$0xff]
        %v2039 = vld [vmem:[%s16 + $0x10] sm:$0xff]
        %v2040 = vld [vmem:[%s16 + $0x18] sm:$0xf]
        %v2041 = vld [vmem:[%s16 + $0x1c] sm:$0xff]
        %v2042 = vld [vmem:[%s16 + $0x24] sm:$0xff]
        %v2043 = vld [vmem:[%s16 + $0x2c] sm:$0xff]
        %v2044 = vld [vmem:[%s16 + $0x34] sm:$0xf]
        %v2045 = vld [vmem:[%s16 + $0x38] sm:$0xff]
        %v2046 = vld [vmem:[%s16 + $0x40] sm:$0xff]
        %v2047 = vld [vmem:[%s16 + $0x48] sm:$0xff]
        %v2048 = vld [vmem:[%s16 + $0x50] sm:$0xf]
        %v2049 = vld [vmem:[%s16 + $0x54] sm:$0xff]
        %v2050 = vld [vmem:[%s16 + $0x5c] sm:$0xff]
        %v2051 = vld [vmem:[%s16 + $0x64] sm:$0xff]
        %v2052 = vld [vmem:[%s16 + $0x6c] sm:$0xf]
        %v2053 = vld [vmem:[%s16 + $0x70] sm:$0xff]
        %v2054 = vld [vmem:[%s16 + $0x78] sm:$0xff]
        %v2055 = vld [vmem:[%s16 + $0x80] sm:$0xff]
        %v2056 = vld [vmem:[%s16 + $0x88] sm:$0xf]
        %v2057 = vld [vmem:[%s16 + $0x8c] sm:$0xff]
        %v2058 = vld [vmem:[%s16 + $0x94] sm:$0xff]
        %v2059 = vld [vmem:[%s16 + $0x9c] sm:$0xff]
        %v2060 = vld [vmem:[%s16 + $0xa4] sm:$0xf]
        %v2061 = vld [vmem:[%s16 + $0xa8] sm:$0xff]
        %v2062 = vld [vmem:[%s16 + $0xb0] sm:$0xff]
        %v2063 = vld [vmem:[%s16 + $0xb8] sm:$0xff]
        %v2064 = vld [vmem:[%s16 + $0xc0] sm:$0xf]
        %v2065 = vld [vmem:[%s16 + $0xc4] sm:$0xff]
        %v2066 = vld [vmem:[%s16 + $0xcc] sm:$0xff]
        %v2067 = vld [vmem:[%s16 + $0xd4] sm:$0xff]
        %v2068 = vld [vmem:[%s16 + $0xdc] sm:$0xf]
        %v2069 = vld [vmem:[%s16 + $0xe0] sm:$0xff]
        %v2070 = vld [vmem:[%s16 + $0xe8] sm:$0xff]
        %v2071 = vld [vmem:[%s16 + $0xf0] sm:$0xff]
        %v2072 = vld [vmem:[%s16 + $0xf8] sm:$0xf]
        %v2073 = vld [vmem:[%s16 + $0xfc] sm:$0xff]
        %v2074 = vld [vmem:[%s16 + $0x104] sm:$0xff]
        %v2075 = vld [vmem:[%s16 + $0x10c] sm:$0xff]
        %v2076 = vld [vmem:[%s16 + $0x114] sm:$0xf]
        %v2077 = vld [vmem:[%s16 + $0x118] sm:$0xff]
        %v2078 = vld [vmem:[%s16 + $0x120] sm:$0xff]
        %v2079 = vld [vmem:[%s16 + $0x128] sm:$0xff]
        %v2080 = vld [vmem:[%s16 + $0x130] sm:$0xf]
        %v2081 = vld [vmem:[%s16 + $0x134] sm:$0xff]
        %v2082 = vld [vmem:[%s16 + $0x13c] sm:$0xff]
        %v2083 = vld [vmem:[%s16 + $0x144] sm:$0xff]
        %v2084 = vld [vmem:[%s16 + $0x14c] sm:$0xf]
        %v2085 = vld [vmem:[%s16 + $0x150] sm:$0xff]
        %v2086 = vld [vmem:[%s16 + $0x158] sm:$0xff]
        %v2087 = vld [vmem:[%s16 + $0x160] sm:$0xff]
        %v2088 = vld [vmem:[%s16 + $0x168] sm:$0xf]
        %v2089 = vld [vmem:[%s16 + $0x16c] sm:$0xff]
        %v2090 = vld [vmem:[%s16 + $0x174] sm:$0xff]
        %v2091 = vld [vmem:[%s16 + $0x17c] sm:$0xff]
        %v2092 = vld [vmem:[%s16 + $0x184] sm:$0xf]
        %v2093 = vld [vmem:[%s16 + $0x188] sm:$0xff]
        %v2094 = vld [vmem:[%s16 + $0x190] sm:$0xff]
        %v2095 = vld [vmem:[%s16 + $0x198] sm:$0xff]
        %v2096 = vld [vmem:[%s16 + $0x1a0] sm:$0xf]
        %v2097 = vld [vmem:[%s16 + $0x1a4] sm:$0xff]
        %v2098 = vld [vmem:[%s16 + $0x1ac] sm:$0xff]
        %v2099 = vld [vmem:[%s16 + $0x1b4] sm:$0xff]
        %v2100 = vld [vmem:[%s16 + $0x1bc] sm:$0xf]
        %v2101 = vld [vmem:[%s17] sm:$0x7f]
        %v2103 = vlaneseq
        %v2104 = vshrl.u32 %v2103, 7
        %v2105 = vsub.s32 0, %v2104
        %v2106 = vrot.slane %v2101, %v2105
        %v2107 = vlaneseq
        %v2108 = vshrl.u32 %v2107, 7
        %v2109 = vsub.s32 1, %v2108
        %v2110 = vrot.slane %v2101, %v2109
        %v2111 = vlaneseq
        %v2112 = vshrl.u32 %v2111, 7
        %v2113 = vsub.s32 2, %v2112
        %v2114 = vrot.slane %v2101, %v2113
        %v2115 = vlaneseq
        %v2116 = vshrl.u32 %v2115, 7
        %v2117 = vsub.s32 3, %v2116
        %v2118 = vrot.slane %v2101, %v2117
        %v2119 = vlaneseq
        %v2120 = vshrl.u32 %v2119, 7
        %v2121 = vsub.s32 4, %v2120
        %v2122 = vrot.slane %v2101, %v2121
        %v2123 = vlaneseq
        %v2124 = vshrl.u32 %v2123, 7
        %v2125 = vsub.s32 5, %v2124
        %v2126 = vrot.slane %v2101, %v2125
        %v2127 = vlaneseq
        %v2128 = vshrl.u32 %v2127, 7
        %v2129 = vsub.s32 6, %v2128
        %v2130 = vrot.slane %v2101, %v2129
        %v2202 = vunpack.c.l.b16 %v2037
        %v2203 = vunpack.c.h.b16 %v2037
        %v2204 = vunpack.c.l.b16 %v2038
        %v2205 = vunpack.c.h.b16 %v2038
        %v2206 = vunpack.c.l.b16 %v2039
        %v2207 = vunpack.c.h.b16 %v2039
        %v2208 = vunpack.c.l.b16 %v2040
        %v2209 = vunpack.c.l.b16 %v2041
        %v2210 = vunpack.c.h.b16 %v2041
        %v2211 = vunpack.c.l.b16 %v2042
        %v2212 = vunpack.c.h.b16 %v2042
        %v2213 = vunpack.c.l.b16 %v2043
        %v2214 = vunpack.c.h.b16 %v2043
        %v2215 = vunpack.c.l.b16 %v2044
        %v2216 = vunpack.c.l.b16 %v2045
        %v2217 = vunpack.c.h.b16 %v2045
        %v2218 = vunpack.c.l.b16 %v2046
        %v2219 = vunpack.c.h.b16 %v2046
        %v2220 = vunpack.c.l.b16 %v2047
        %v2221 = vunpack.c.h.b16 %v2047
        %v2222 = vunpack.c.l.b16 %v2048
        %v2223 = vunpack.c.l.b16 %v2049
        %v2224 = vunpack.c.h.b16 %v2049
        %v2225 = vunpack.c.l.b16 %v2050
        %v2226 = vunpack.c.h.b16 %v2050
        %v2227 = vunpack.c.l.b16 %v2051
        %v2228 = vunpack.c.h.b16 %v2051
        %v2229 = vunpack.c.l.b16 %v2052
        %v2230 = vunpack.c.l.b16 %v2053
        %v2231 = vunpack.c.h.b16 %v2053
        %v2232 = vunpack.c.l.b16 %v2054
        %v2233 = vunpack.c.h.b16 %v2054
        %v2234 = vunpack.c.l.b16 %v2055
        %v2235 = vunpack.c.h.b16 %v2055
        %v2236 = vunpack.c.l.b16 %v2056
        %v2237 = vunpack.c.l.b16 %v2057
        %v2238 = vunpack.c.h.b16 %v2057
        %v2239 = vunpack.c.l.b16 %v2058
        %v2240 = vunpack.c.h.b16 %v2058
        %v2241 = vunpack.c.l.b16 %v2059
        %v2242 = vunpack.c.h.b16 %v2059
        %v2243 = vunpack.c.l.b16 %v2060
        %v2244 = vunpack.c.l.b16 %v2061
        %v2245 = vunpack.c.h.b16 %v2061
        %v2246 = vunpack.c.l.b16 %v2062
        %v2247 = vunpack.c.h.b16 %v2062
        %v2248 = vunpack.c.l.b16 %v2063
        %v2249 = vunpack.c.h.b16 %v2063
        %v2250 = vunpack.c.l.b16 %v2064
        %v2251 = vunpack.c.l.b16 %v2065
        %v2252 = vunpack.c.h.b16 %v2065
        %v2253 = vunpack.c.l.b16 %v2066
        %v2254 = vunpack.c.h.b16 %v2066
        %v2255 = vunpack.c.l.b16 %v2067
        %v2256 = vunpack.c.h.b16 %v2067
        %v2257 = vunpack.c.l.b16 %v2068
        %v2258 = vunpack.c.l.b16 %v2069
        %v2259 = vunpack.c.h.b16 %v2069
        %v2260 = vunpack.c.l.b16 %v2070
        %v2261 = vunpack.c.h.b16 %v2070
        %v2262 = vunpack.c.l.b16 %v2071
        %v2263 = vunpack.c.h.b16 %v2071
        %v2264 = vunpack.c.l.b16 %v2072
        %v2265 = vunpack.c.l.b16 %v2073
        %v2266 = vunpack.c.h.b16 %v2073
        %v2267 = vunpack.c.l.b16 %v2074
        %v2268 = vunpack.c.h.b16 %v2074
        %v2269 = vunpack.c.l.b16 %v2075
        %v2270 = vunpack.c.h.b16 %v2075
        %v2271 = vunpack.c.l.b16 %v2076
        %v2272 = vunpack.c.l.b16 %v2077
        %v2273 = vunpack.c.h.b16 %v2077
        %v2274 = vunpack.c.l.b16 %v2078
        %v2275 = vunpack.c.h.b16 %v2078
        %v2276 = vunpack.c.l.b16 %v2079
        %v2277 = vunpack.c.h.b16 %v2079
        %v2278 = vunpack.c.l.b16 %v2080
        %v2279 = vunpack.c.l.b16 %v2081
        %v2280 = vunpack.c.h.b16 %v2081
        %v2281 = vunpack.c.l.b16 %v2082
        %v2282 = vunpack.c.h.b16 %v2082
        %v2283 = vunpack.c.l.b16 %v2083
        %v2284 = vunpack.c.h.b16 %v2083
        %v2285 = vunpack.c.l.b16 %v2084
        %v2286 = vunpack.c.l.b16 %v2085
        %v2287 = vunpack.c.h.b16 %v2085
        %v2288 = vunpack.c.l.b16 %v2086
        %v2289 = vunpack.c.h.b16 %v2086
        %v2290 = vunpack.c.l.b16 %v2087
        %v2291 = vunpack.c.h.b16 %v2087
        %v2292 = vunpack.c.l.b16 %v2088
        %v2293 = vunpack.c.l.b16 %v2089
        %v2294 = vunpack.c.h.b16 %v2089
        %v2295 = vunpack.c.l.b16 %v2090
        %v2296 = vunpack.c.h.b16 %v2090
        %v2297 = vunpack.c.l.b16 %v2091
        %v2298 = vunpack.c.h.b16 %v2091
        %v2299 = vunpack.c.l.b16 %v2092
        %v2300 = vunpack.c.l.b16 %v2093
        %v2301 = vunpack.c.h.b16 %v2093
        %v2302 = vunpack.c.l.b16 %v2094
        %v2303 = vunpack.c.h.b16 %v2094
        %v2304 = vunpack.c.l.b16 %v2095
        %v2305 = vunpack.c.h.b16 %v2095
        %v2306 = vunpack.c.l.b16 %v2096
        %v2307 = vunpack.c.l.b16 %v2097
        %v2308 = vunpack.c.h.b16 %v2097
        %v2309 = vunpack.c.l.b16 %v2098
        %v2310 = vunpack.c.h.b16 %v2098
        %v2311 = vunpack.c.l.b16 %v2099
        %v2312 = vunpack.c.h.b16 %v2099
        %v2313 = vunpack.c.l.b16 %v2100
        %v2314 = vpack.c.b16 %v2209, %v2202
        %v2315 = vpack.c.b16 %v2210, %v2203
        %v2316 = vpack.c.b16 %v2211, %v2204
        %v2317 = vpack.c.b16 %v2212, %v2205
        %v2318 = vpack.c.b16 %v2213, %v2206
        %v2319 = vpack.c.b16 %v2214, %v2207
        %v2320 = vpack.c.b16 %v2215, %v2208
        %v2321 = vpack.c.b16 %v2223, %v2216
        %v2322 = vpack.c.b16 %v2224, %v2217
        %v2323 = vpack.c.b16 %v2225, %v2218
        %v2324 = vpack.c.b16 %v2226, %v2219
        %v2325 = vpack.c.b16 %v2227, %v2220
        %v2326 = vpack.c.b16 %v2228, %v2221
        %v2327 = vpack.c.b16 %v2229, %v2222
        %v2328 = vpack.c.b16 %v2237, %v2230
        %v2329 = vpack.c.b16 %v2238, %v2231
        %v2330 = vpack.c.b16 %v2239, %v2232
        %v2331 = vpack.c.b16 %v2240, %v2233
        %v2332 = vpack.c.b16 %v2241, %v2234
        %v2333 = vpack.c.b16 %v2242, %v2235
        %v2334 = vpack.c.b16 %v2243, %v2236
        %v2335 = vpack.c.b16 %v2251, %v2244
        %v2336 = vpack.c.b16 %v2252, %v2245
        %v2337 = vpack.c.b16 %v2253, %v2246
        %v2338 = vpack.c.b16 %v2254, %v2247
        %v2339 = vpack.c.b16 %v2255, %v2248
        %v2340 = vpack.c.b16 %v2256, %v2249
        %v2341 = vpack.c.b16 %v2257, %v2250
        %v2342 = vpack.c.b16 %v2265, %v2258
        %v2343 = vpack.c.b16 %v2266, %v2259
        %v2344 = vpack.c.b16 %v2267, %v2260
        %v2345 = vpack.c.b16 %v2268, %v2261
        %v2346 = vpack.c.b16 %v2269, %v2262
        %v2347 = vpack.c.b16 %v2270, %v2263
        %v2348 = vpack.c.b16 %v2271, %v2264
        %v2349 = vpack.c.b16 %v2279, %v2272
        %v2350 = vpack.c.b16 %v2280, %v2273
        %v2351 = vpack.c.b16 %v2281, %v2274
        %v2352 = vpack.c.b16 %v2282, %v2275
        %v2353 = vpack.c.b16 %v2283, %v2276
        %v2354 = vpack.c.b16 %v2284, %v2277
        %v2355 = vpack.c.b16 %v2285, %v2278
        %v2356 = vpack.c.b16 %v2293, %v2286
        %v2357 = vpack.c.b16 %v2294, %v2287
        %v2358 = vpack.c.b16 %v2295, %v2288
        %v2359 = vpack.c.b16 %v2296, %v2289
        %v2360 = vpack.c.b16 %v2297, %v2290
        %v2361 = vpack.c.b16 %v2298, %v2291
        %v2362 = vpack.c.b16 %v2299, %v2292
        %v2363 = vpack.c.b16 %v2307, %v2300
        %v2364 = vpack.c.b16 %v2308, %v2301
        %v2365 = vpack.c.b16 %v2309, %v2302
        %v2366 = vpack.c.b16 %v2310, %v2303
        %v2367 = vpack.c.b16 %v2311, %v2304
        %v2368 = vpack.c.b16 %v2312, %v2305
        %v2369 = vpack.c.b16 %v2313, %v2306
        %2426 = vmatprep.subr.bf16.mxu0 %v2364
        %2427 = vmatpush1.bf16.msra.mxu0 %v2363
        %2428 = vmatprep.subr.bf16.mxu0 %v2357
        %2429 = vmatpush1.bf16.msra.mxu0 %v2356
        %2430 = vmatprep.subr.bf16.mxu0 %v2350
        %2431 = vmatpush1.bf16.msra.mxu0 %v2349
        %2432 = vmatprep.subr.bf16.mxu0 %v2343
        %2433 = vmatpush1.bf16.msra.mxu0 %v2342
        %2434 = vmatprep.subr.bf16.mxu0 %v2336
        %2435 = vmatpush1.bf16.msra.mxu0 %v2335
        %2436 = vmatprep.subr.bf16.mxu0 %v2329
        %2437 = vmatpush1.bf16.msra.mxu0 %v2328
        %2438 = vmatprep.subr.bf16.mxu0 %v2322
        %2439 = vmatpush1.bf16.msra.mxu0 %v2321
        %2440 = vmatprep.subr.bf16.mxu0 %v2315
        %2441 = vmatpush1.bf16.msra.mxu0 %v2314
        %2442 = vmatprep.subr.bf16.mxu0 0
        %2443 = vmatpush2.bf16.msra.mxu0 0
        %2444 = vmatprep.subr.bf16.mxu0 0
        %2445 = vmatpush2.bf16.msra.mxu0 0
        %2446 = vmatprep.subr.bf16.mxu0 0
        %2447 = vmatpush2.bf16.msra.mxu0 0
        %2448 = vmatprep.subr.bf16.mxu0 0
        %2449 = vmatpush2.bf16.msra.mxu0 0
        %2450 = vmatprep.subr.bf16.mxu0 0
        %2451 = vmatpush2.bf16.msra.mxu0 0
        %2452 = vmatprep.subr.bf16.mxu0 0
        %2453 = vmatpush2.bf16.msra.mxu0 0
        %2454 = vmatprep.subr.bf16.mxu0 0
        %2455 = vmatpush2.bf16.msra.mxu0 0
        %2456 = vmatprep.subr.bf16.mxu0 0
        %2457 = vmatpush2.bf16.msra.mxu0 0
        %2458 = vmatprep.mubr.bf16.mxu0 0
        %2459 = vmatmul.mubr.bf16.gmra.mxu0 %v2035
        %v2460 = vpop.f32.mrf.mxu0
        %v2461 = vadd.f32 %v2106, %v2460
        %v2462 = vpop.f32.mrf.mxu0
        %v2463 = vadd.f32 %v2110, %v2462
        %v2464 = vpop.f32.mrf.mxu0
        %v2465 = vadd.f32 %v2106, %v2464
        %v2466 = vpop.f32.mrf.mxu0
        %v2467 = vadd.f32 %v2110, %v2466
        %2468 = vmatprep.mubr.bf16.mxu0 0
        %2469 = vmatmul.mubr.bf16.gmra.mxu0 %v2036
        %v2470 = vpop.f32.mrf.mxu0
        %v2471 = vadd.f32 %v2106, %v2470
        %v2472 = vpop.f32.mrf.mxu0
        %v2473 = vadd.f32 %v2110, %v2472
        %v2474 = vpop.f32.mrf.mxu0
        %v2475 = vadd.f32 %v2106, %v2474
        %v2476 = vpop.f32.mrf.mxu0
        %v2477 = vadd.f32 %v2110, %v2476
        %2478 = vdwg.mxu0
        %2479 = vmatprep.subr.bf16.mxu0 %v2366
        %2480 = vmatpush1.bf16.msra.mxu0 %v2365
        %2481 = vmatprep.subr.bf16.mxu0 %v2359
        %2482 = vmatpush1.bf16.msra.mxu0 %v2358
        %2483 = vmatprep.subr.bf16.mxu0 %v2352
        %2484 = vmatpush1.bf16.msra.mxu0 %v2351
        %2485 = vmatprep.subr.bf16.mxu0 %v2345
        %2486 = vmatpush1.bf16.msra.mxu0 %v2344
        %2487 = vmatprep.subr.bf16.mxu0 %v2338
        %2488 = vmatpush1.bf16.msra.mxu0 %v2337
        %2489 = vmatprep.subr.bf16.mxu0 %v2331
        %2490 = vmatpush1.bf16.msra.mxu0 %v2330
        %2491 = vmatprep.subr.bf16.mxu0 %v2324
        %2492 = vmatpush1.bf16.msra.mxu0 %v2323
        %2493 = vmatprep.subr.bf16.mxu0 %v2317
        %2494 = vmatpush1.bf16.msra.mxu0 %v2316
        %2495 = vmatprep.subr.bf16.mxu0 0
        %2496 = vmatpush2.bf16.msra.mxu0 0
        %2497 = vmatprep.subr.bf16.mxu0 0
        %2498 = vmatpush2.bf16.msra.mxu0 0
        %2499 = vmatprep.subr.bf16.mxu0 0
        %2500 = vmatpush2.bf16.msra.mxu0 0
        %2501 = vmatprep.subr.bf16.mxu0 0
        %2502 = vmatpush2.bf16.msra.mxu0 0
        %2503 = vmatprep.subr.bf16.mxu0 0
        %2504 = vmatpush2.bf16.msra.mxu0 0
        %2505 = vmatprep.subr.bf16.mxu0 0
        %2506 = vmatpush2.bf16.msra.mxu0 0
        %2507 = vmatprep.subr.bf16.mxu0 0
        %2508 = vmatpush2.bf16.msra.mxu0 0
        %2509 = vmatprep.subr.bf16.mxu0 0
        %2510 = vmatpush2.bf16.msra.mxu0 0
        %2511 = vmatprep.mubr.bf16.mxu0 0
        %2512 = vmatmul.mubr.bf16.gmra.mxu0 %v2035
        %v2513 = vpop.f32.mrf.mxu0
        %v2514 = vadd.f32 %v2114, %v2513
        %v2515 = vpop.f32.mrf.mxu0
        %v2516 = vadd.f32 %v2118, %v2515
        %v2517 = vpop.f32.mrf.mxu0
        %v2518 = vadd.f32 %v2114, %v2517
        %v2519 = vpop.f32.mrf.mxu0
        %v2520 = vadd.f32 %v2118, %v2519
        %2521 = vmatprep.mubr.bf16.mxu0 0
        %2522 = vmatmul.mubr.bf16.gmra.mxu0 %v2036
        %v2523 = vpop.f32.mrf.mxu0
        %v2524 = vadd.f32 %v2114, %v2523
        %v2525 = vpop.f32.mrf.mxu0
        %v2526 = vadd.f32 %v2118, %v2525
        %v2527 = vpop.f32.mrf.mxu0
        %v2528 = vadd.f32 %v2114, %v2527
        %v2529 = vpop.f32.mrf.mxu0
        %v2530 = vadd.f32 %v2118, %v2529
        %2531 = vdwg.mxu0
        %2532 = vmatprep.subr.bf16.mxu0 %v2368
        %2533 = vmatpush1.bf16.msra.mxu0 %v2367
        %2534 = vmatprep.subr.bf16.mxu0 %v2361
        %2535 = vmatpush1.bf16.msra.mxu0 %v2360
        %2536 = vmatprep.subr.bf16.mxu0 %v2354
        %2537 = vmatpush1.bf16.msra.mxu0 %v2353
        %2538 = vmatprep.subr.bf16.mxu0 %v2347
        %2539 = vmatpush1.bf16.msra.mxu0 %v2346
        %2540 = vmatprep.subr.bf16.mxu0 %v2340
        %2541 = vmatpush1.bf16.msra.mxu0 %v2339
        %2542 = vmatprep.subr.bf16.mxu0 %v2333
        %2543 = vmatpush1.bf16.msra.mxu0 %v2332
        %2544 = vmatprep.subr.bf16.mxu0 %v2326
        %2545 = vmatpush1.bf16.msra.mxu0 %v2325
        %2546 = vmatprep.subr.bf16.mxu0 %v2319
        %2547 = vmatpush1.bf16.msra.mxu0 %v2318
        %2548 = vmatprep.subr.bf16.mxu0 0
        %2549 = vmatpush2.bf16.msra.mxu0 0
        %2550 = vmatprep.subr.bf16.mxu0 0
        %2551 = vmatpush2.bf16.msra.mxu0 0
        %2552 = vmatprep.subr.bf16.mxu0 0
        %2553 = vmatpush2.bf16.msra.mxu0 0
        %2554 = vmatprep.subr.bf16.mxu0 0
        %2555 = vmatpush2.bf16.msra.mxu0 0
        %2556 = vmatprep.subr.bf16.mxu0 0
        %2557 = vmatpush2.bf16.msra.mxu0 0
        %2558 = vmatprep.subr.bf16.mxu0 0
        %2559 = vmatpush2.bf16.msra.mxu0 0
        %2560 = vmatprep.subr.bf16.mxu0 0
        %2561 = vmatpush2.bf16.msra.mxu0 0
        %2562 = vmatprep.subr.bf16.mxu0 0
        %2563 = vmatpush2.bf16.msra.mxu0 0
        %2564 = vmatprep.mubr.bf16.mxu0 0
        %2565 = vmatmul.mubr.bf16.gmra.mxu0 %v2035
        %v2566 = vpop.f32.mrf.mxu0
        %v2567 = vadd.f32 %v2122, %v2566
        %v2568 = vpop.f32.mrf.mxu0
        %v2569 = vadd.f32 %v2126, %v2568
        %v2570 = vpop.f32.mrf.mxu0
        %v2571 = vadd.f32 %v2122, %v2570
        %v2572 = vpop.f32.mrf.mxu0
        %v2573 = vadd.f32 %v2126, %v2572
        %2574 = vmatprep.mubr.bf16.mxu0 0
        %2575 = vmatmul.mubr.bf16.gmra.mxu0 %v2036
        %v2576 = vpop.f32.mrf.mxu0
        %v2577 = vadd.f32 %v2122, %v2576
        %v2578 = vpop.f32.mrf.mxu0
        %v2579 = vadd.f32 %v2126, %v2578
        %v2580 = vpop.f32.mrf.mxu0
        %v2581 = vadd.f32 %v2122, %v2580
        %v2582 = vpop.f32.mrf.mxu0
        %v2583 = vadd.f32 %v2126, %v2582
        %2584 = vdwg.mxu0
        %2585 = vmatprep.subr.bf16.mxu0 0
        %2586 = vmatpush1.bf16.msra.mxu0 %v2369
        %2587 = vmatprep.subr.bf16.mxu0 0
        %2588 = vmatpush1.bf16.msra.mxu0 %v2362
        %2589 = vmatprep.subr.bf16.mxu0 0
        %2590 = vmatpush1.bf16.msra.mxu0 %v2355
        %2591 = vmatprep.subr.bf16.mxu0 0
        %2592 = vmatpush1.bf16.msra.mxu0 %v2348
        %2593 = vmatprep.subr.bf16.mxu0 0
        %2594 = vmatpush1.bf16.msra.mxu0 %v2341
        %2595 = vmatprep.subr.bf16.mxu0 0
        %2596 = vmatpush1.bf16.msra.mxu0 %v2334
        %2597 = vmatprep.subr.bf16.mxu0 0
        %2598 = vmatpush1.bf16.msra.mxu0 %v2327
        %2599 = vmatprep.subr.bf16.mxu0 0
        %2600 = vmatpush1.bf16.msra.mxu0 %v2320
        %2601 = vmatprep.subr.bf16.mxu0 0
        %2602 = vmatpush2.bf16.msra.mxu0 0
        %2603 = vmatprep.subr.bf16.mxu0 0
        %2604 = vmatpush2.bf16.msra.mxu0 0
        %2605 = vmatprep.subr.bf16.mxu0 0
        %2606 = vmatpush2.bf16.msra.mxu0 0
        %2607 = vmatprep.subr.bf16.mxu0 0
        %2608 = vmatpush2.bf16.msra.mxu0 0
        %2609 = vmatprep.subr.bf16.mxu0 0
        %2610 = vmatpush2.bf16.msra.mxu0 0
        %2611 = vmatprep.subr.bf16.mxu0 0
        %2612 = vmatpush2.bf16.msra.mxu0 0
        %2613 = vmatprep.subr.bf16.mxu0 0
        %2614 = vmatpush2.bf16.msra.mxu0 0
        %2615 = vmatprep.subr.bf16.mxu0 0
        %2616 = vmatpush2.bf16.msra.mxu0 0
        %2617 = vmatprep.mubr.bf16.mxu0 0
        %2618 = vmatmul.mubr.bf16.gmra.mxu0 %v2035
        %v2619 = vpop.f32.mrf.mxu0
        %v2620 = vadd.f32 %v2130, %v2619
        %v2621 = vpop.f32.mrf.mxu0
        %v2622 = vpop.f32.mrf.mxu0
        %v2623 = vadd.f32 %v2130, %v2622
        %v2624 = vpop.f32.mrf.mxu0
        %2625 = vmatprep.mubr.bf16.mxu0 0
        %2626 = vmatmul.mubr.bf16.gmra.mxu0 %v2036
        %v2627 = vpop.f32.mrf.mxu0
        %v2628 = vadd.f32 %v2130, %v2627
        %v2629 = vpop.f32.mrf.mxu0
        %v2630 = vpop.f32.mrf.mxu0
        %v2631 = vadd.f32 %v2130, %v2630
        %v2632 = vpop.f32.mrf.mxu0
        %2633 = vdwg.mxu0
        %v2634 = vtanh.pop %v2461
        %v2635 = vtanh.pop %v2463
        %v2636 = vtanh.pop %v2514
        %v2637 = vtanh.pop %v2516
        %v2638 = vtanh.pop %v2567
        %v2639 = vtanh.pop %v2569
        %v2640 = vtanh.pop %v2620
        %v2641 = vtanh.pop %v2465
        %v2642 = vtanh.pop %v2467
        %v2643 = vtanh.pop %v2518
        %v2644 = vtanh.pop %v2520
        %v2645 = vtanh.pop %v2571
        %v2646 = vtanh.pop %v2573
        %v2647 = vtanh.pop %v2623
        %v2648 = vtanh.pop %v2471
        %v2649 = vtanh.pop %v2473
        %v2650 = vtanh.pop %v2524
        %v2651 = vtanh.pop %v2526
        %v2652 = vtanh.pop %v2577
        %v2653 = vtanh.pop %v2579
        %v2654 = vtanh.pop %v2628
        %v2655 = vtanh.pop %v2475
        %v2656 = vtanh.pop %v2477
        %v2657 = vtanh.pop %v2528
        %v2658 = vtanh.pop %v2530
        %v2659 = vtanh.pop %v2581
        %v2660 = vtanh.pop %v2583
        %v2661 = vtanh.pop %v2631
        %v2662 = vpack.c.bf16 %v2641, %v2634
        %v2663 = vpack.c.bf16 %v2642, %v2635
        %v2664 = vpack.c.bf16 %v2643, %v2636
        %v2665 = vpack.c.bf16 %v2644, %v2637
        %v2666 = vpack.c.bf16 %v2645, %v2638
        %v2667 = vpack.c.bf16 %v2646, %v2639
        %v2668 = vpack.c.bf16 %v2647, %v2640
        %v2669 = vpack.c.bf16 %v2655, %v2648
        %v2670 = vpack.c.bf16 %v2656, %v2649
        %v2671 = vpack.c.bf16 %v2657, %v2650
        %v2672 = vpack.c.bf16 %v2658, %v2651
        %v2673 = vpack.c.bf16 %v2659, %v2652
        %v2674 = vpack.c.bf16 %v2660, %v2653
        %v2675 = vpack.c.bf16 %v2661, %v2654
        %v2690 = vunpack.c.l.b16 %v2662
        %v2691 = vunpack.c.l.b16 %v2663
        %v2692 = vunpack.c.l.b16 %v2664
        %v2693 = vunpack.c.l.b16 %v2665
        %v2694 = vunpack.c.l.b16 %v2666
        %v2695 = vunpack.c.l.b16 %v2667
        %v2696 = vunpack.c.l.b16 %v2668
        %v2697 = vunpack.c.h.b16 %v2662
        %v2698 = vunpack.c.h.b16 %v2663
        %v2699 = vunpack.c.h.b16 %v2664
        %v2700 = vunpack.c.h.b16 %v2665
        %v2701 = vunpack.c.h.b16 %v2666
        %v2702 = vunpack.c.h.b16 %v2667
        %v2703 = vunpack.c.h.b16 %v2668
        %v2704 = vunpack.c.l.b16 %v2669
        %v2705 = vunpack.c.l.b16 %v2670
        %v2706 = vunpack.c.l.b16 %v2671
        %v2707 = vunpack.c.l.b16 %v2672
        %v2708 = vunpack.c.l.b16 %v2673
        %v2709 = vunpack.c.l.b16 %v2674
        %v2710 = vunpack.c.l.b16 %v2675
        %v2711 = vunpack.c.h.b16 %v2669
        %v2712 = vunpack.c.h.b16 %v2670
        %v2713 = vunpack.c.h.b16 %v2671
        %v2714 = vunpack.c.h.b16 %v2672
        %v2715 = vunpack.c.h.b16 %v2673
        %v2716 = vunpack.c.h.b16 %v2674
        %v2717 = vunpack.c.h.b16 %v2675
        %v2718 = vpack.c.b16 %v2691, %v2690
        %v2719 = vpack.c.b16 %v2693, %v2692
        %v2720 = vpack.c.b16 %v2695, %v2694
        %v2721 = vpack.c.b16 %v2696, %v2696
        %v2722 = vpack.c.b16 %v2698, %v2697
        %v2723 = vpack.c.b16 %v2700, %v2699
        %v2724 = vpack.c.b16 %v2702, %v2701
        %v2725 = vpack.c.b16 %v2703, %v2703
        %v2726 = vpack.c.b16 %v2705, %v2704
        %v2727 = vpack.c.b16 %v2707, %v2706
        %v2728 = vpack.c.b16 %v2709, %v2708
        %v2729 = vpack.c.b16 %v2710, %v2710
        %v2730 = vpack.c.b16 %v2712, %v2711
        %v2731 = vpack.c.b16 %v2714, %v2713
        %v2732 = vpack.c.b16 %v2716, %v2715
        %v2733 = vpack.c.b16 %v2717, %v2717
        %2750 = vst [vmem:[%s615] sm:$0xff] %v2718
        %2751 = vst [vmem:[%s615 + $0x8] sm:$0xff] %v2719
        %2752 = vst [vmem:[%s615 + $0x10] sm:$0xff] %v2720
        %vm2753 = vcmask 125952
        %2754 = vst.msk [vmem:[%s615 + $0x18] sm:$0xf] %vm2753, %v2721
        %2755 = vst [vmem:[%s615 + $0x1c] sm:$0xff] %v2722
        %2756 = vst [vmem:[%s615 + $0x24] sm:$0xff] %v2723
        %2757 = vst [vmem:[%s615 + $0x2c] sm:$0xff] %v2724
        %2758 = vst.msk [vmem:[%s615 + $0x34] sm:$0xf] %vm2753, %v2725
        %2759 = vst [vmem:[%s615 + $0x38] sm:$0xff] %v2726
        %2760 = vst [vmem:[%s615 + $0x40] sm:$0xff] %v2727
        %2761 = vst [vmem:[%s615 + $0x48] sm:$0xff] %v2728
        %2762 = vst.msk [vmem:[%s615 + $0x50] sm:$0xf] %vm2753, %v2729
        %2763 = vst [vmem:[%s615 + $0x54] sm:$0xff] %v2730
        %2764 = vst [vmem:[%s615 + $0x5c] sm:$0xff] %v2731
        %2765 = vst [vmem:[%s615 + $0x64] sm:$0xff] %v2732
        %2766 = vst.msk [vmem:[%s615 + $0x6c] sm:$0xf] %vm2753, %v2733
        %s2767 = sand.u32 %s430, 1
        %s2768 = scalar_lea.sflag [#allocation3], %s2767
        %s2769 = sand.u32 %s430, 1
        %s2770 = smul.addr %s2769, 112
        %s2771 = scalar_lea.vmem [#allocation2], %s2770
        %s2772 = smul.u32 4, %s34
        %p2773 = scmp.lt.s32.totalorder %s2772, 7
        %s2774 = scalar_select %p2773, %s2772, 7
        %s2775 = smul.addr %s2774, 8
        %s2776 = scalar_lea.vmem %s19, %s2775
        // Predicated region
        $region93: #{vae_forward.1} parent=91 // pred_check
          %p2777 = pneg %p440
        $region94: #{vae_forward.1} parent=91 // pred_check_branch
          %2779 = sbr.rel (%p2777) target = $region96
        $region95: #{vae_forward.1} parent=91 // pred_region
          %s2780 = smul.u32 4, %s34
          %s2782 = ssub.s32 1792, 1792
          %2783 = vsyncadd %s2768, %s2782
          %s2784 = smul.addr %s2780, 7
          %s2785 = smul.addr %s2784, 64
          %s2786 = scalar_lea.hbm %s18, %s2785
          %s2787 = sshll.u32 %s2771, 4
          %s2788 = int_to_ptr.vmem [resolvable:$true] %s2787
          %2793 = dma.vmem_to_hbm [thread:$0]  %s2788, 1792, %s2786, %s2768, 448, 448, 28
        $region96: #{vae_forward.1} parent=91 // pred_fallthru
          _
        // Predicated region
        $region97: #{vae_forward.1} parent=91 // pred_check
          %p2794 = pneg %p466
        $region98: #{vae_forward.1} parent=91 // pred_check_branch
          %2796 = sbr.rel (%p2794) target = $region100
        $region99: #{vae_forward.1} parent=91 // pred_region
          %s2797 = smul.u32 4, %s34
        $region100: #{vae_forward.1} parent=91 // pred_fallthru
          _
      $region92: #{vae_forward.1} parent=5 // pred_fallthru
        _
      %p2798 = scmp.le.s32.totalorder 2, %s29
      // Predicated region
      $region101: #{vae_forward.1} parent=5 // pred_check
        %p2799 = pneg %p2798
      $region102: #{vae_forward.1} parent=5 // pred_check_branch
        %2801 = sbr.rel (%p2799) target = $region104
      $region103: #{vae_forward.1} parent=5 // pred_region
        %s2802 = ssub.s32 %s29, 2
        // Predicated region
        $region105: #{vae_forward.1} parent=103 // pred_check
          %p2803 = pneg %p446
        $region106: #{vae_forward.1} parent=103 // pred_check_branch
          %2805 = sbr.rel (%p2803) target = $region108
        $region107: #{vae_forward.1} parent=103 // pred_region
          %s2806 = sand.u32 %s431, 1
          %s2807 = scalar_lea.sflag [#allocation3], %s2806
          %s2808 = sand.u32 %s431, 1
          %s2809 = smul.addr %s2808, 112
          %s2810 = scalar_lea.vmem [#allocation2], %s2809
          %2811 = dma.done %s2807, 1792
        $region108: #{vae_forward.1} parent=103 // pred_fallthru
          _
        // Predicated region
        $region109: #{vae_forward.1} parent=103 // pred_check
          %p2812 = pneg %p472
        $region110: #{vae_forward.1} parent=103 // pred_check_branch
          %2814 = sbr.rel (%p2812) target = $region112
        $region111: #{vae_forward.1} parent=103 // pred_region
          %s2815 = smul.u32 4, %s35
          %p2816 = scmp.lt.s32.totalorder %s2815, 7
          %s2817 = scalar_select %p2816, %s2815, 7
          %s2818 = smul.addr %s2817, 8
          %s2819 = scalar_lea.vmem %s19, %s2818
        $region112: #{vae_forward.1} parent=103 // pred_fallthru
          _
      $region104: #{vae_forward.1} parent=5 // pred_fallthru
        _
    $region6: #{vae_forward.1} parent=1 // loop_footer
      %s33 = sadd.s32 1, %s29
    $region7: #{vae_forward.1} parent=1 // loop_footer_branch
      %28 = sbr.rel target = $region3
    $region8: #{vae_forward.1} parent=1 // loop_exit
      _
    %2820 = vsyncpa [#allocation3], 1
    %s2821 = scalar_lea.sflag [#allocation3], 1
    %2822 = vsyncpa %s2821, 1

</llo_original>
